<compile_context>
chip_gen: v7x
topology: tpu7x:2x2x1
jax: 0.10.0
libtpu: 0.0.40
codegen_flags: <defaults>
</compile_context>

<pallas_src>
import functools

import jax
import jax.numpy as jnp
from jax import lax
from jax.experimental import pallas as pl
from jax.experimental.pallas import tpu as pltpu


def _fp_dynamic_kernel(num_layers, n_strips, strip_w,
                       x1aug_ref, pid1_ref, x2aug_ref, pid2_ref, m0_ref,
                       pts1_ref, *rest):
    out_ref = rest[-2]
    h0b_ref = rest[-1]          # VMEM scratch (H0, tile_n) f32
    wrefs = rest[:-2]

    s = x2aug_ref.shape[1]

    # ---- NN + interpolation phase, strip-mined over 128-lane strips so the
    # ---- live (S, strip) working set stays register-resident.
    def strip_body(j, carry):
        off = pl.multiple_of(j * strip_w, strip_w)
        x2aug = x2aug_ref[0]                                  # (S, 5)  f32
        p2 = pid2_ref[0]                                      # (S, 1)  int32
        m0 = m0_ref[0]                                        # (H0, S) f32
        x1a = x1aug_ref[0, :, pl.ds(off, strip_w)]            # (5, strip)
        p1s = pid1_ref[0, :, pl.ds(off, strip_w)]             # (1, strip)

        # squared distances, one MXU pass:
        #   [-2*x2 | sq2 | 1] @ [x1 ; 1 ; sq1] = sq1 + sq2 - 2*x2.x1
        dist = jnp.dot(x2aug, x1a, preferred_element_type=jnp.float32)
        # piece-restricted knn (kept on the VPU -- see header comment)
        dist = jnp.where(p2 != p1s, jnp.float32(1e8), dist)

        # 3-NN with fused inverse-distance weight accumulation.
        # Single-pass min; exact ties share the slot (never happens for
        # continuous coordinates in the non-degenerate case).
        w_acc = jnp.zeros((s, strip_w), jnp.float32)
        wsum = jnp.zeros((1, strip_w), jnp.float32)
        dwork = dist
        for _ in range(3):
            mval = jnp.min(dwork, axis=0, keepdims=True)      # (1, strip) XLU
            hit = dwork == mval                               # (S, strip)
            r = pl.reciprocal(mval + 1e-8, approx=False)      # EUP
            w_acc = w_acc + jnp.where(hit, r, 0.0)
            wsum = wsum + r
            dwork = jnp.where(hit, jnp.float32(3e38), dwork)

        # interpolation fused with the points2 half of MLP layer 0:
        #   h0b = (W0b^T @ points2) @ w_acc * 1/sum(recip)
        h0b = jnp.dot(m0, w_acc, preferred_element_type=jnp.float32)
        h0b = h0b * pl.reciprocal(wsum, approx=False)
        h0b_ref[:, pl.ds(off, strip_w)] = h0b
        return carry

    lax.fori_loop(0, n_strips, strip_body, 0)

    # ---- MLP (1x1 conv + folded BN + ReLU); activations stay (C, TN) ----
    w0a = wrefs[0][...]                                       # (H0, D1)
    b0 = wrefs[1][...]                                        # (H0, 1) f32
    pts1 = pts1_ref[0]                                        # (D1, TN)
    h = (jnp.dot(w0a, pts1, preferred_element_type=jnp.float32)
         + h0b_ref[...] + b0)
    h = jnp.maximum(h, 0.0)
    k = 2
    for _ in range(num_layers - 1):
        wl = wrefs[k][...]
        bl = wrefs[k + 1][...]
        k += 2
        h = jnp.maximum(
            jnp.dot(wl, h.astype(wl.dtype), preferred_element_type=jnp.float32)
            + bl, 0.0)

    out_ref[0] = h.astype(out_ref.dtype)


def pointnet_fp_dynamic(xyz1, xyz2, piece_id1, piece_id2, points1, points2,
                        folded_ws, folded_bs, *, tile_n=512, strip_w=128,
                        mlp_dtype=jnp.bfloat16):
    """xyz1:[B,3,N] xyz2:[B,3,S] piece_id1:[B,N] piece_id2:[B,S]
       points1:[B,D1,N] points2:[B,D,S]  ->  [B, mlp[-1], N]"""
    B, _, N = xyz1.shape
    S = xyz2.shape[2]
    D = points2.shape[1]
    D1 = points1.shape[1]
    num_layers = len(folded_bs)
    h0 = folded_bs[0].shape[-1]
    h_last = folded_bs[-1].shape[-1]

    assert N % strip_w == 0, (N, strip_w)
    tile_n = max(strip_w, min(tile_n, N))
    while N % tile_n:
        tile_n -= strip_w
    # v7x megacore: keep >= 2 parallel grid steps when possible.
    while (B * (N // tile_n) < 2 and tile_n > strip_w
           and (tile_n // 2) % strip_w == 0 and N % (tile_n // 2) == 0):
        tile_n //= 2
    assert tile_n % strip_w == 0 and N % tile_n == 0
    n_strips = tile_n // strip_w

    # augmented query slab: [x; y; z; 1; ||x||^2]  (rows of the K dimension)
    x1 = xyz1.astype(jnp.float32)
    sq1 = jnp.sum(x1 * x1, axis=1, keepdims=True)
    x1aug = jnp.concatenate([x1, jnp.ones_like(sq1), sq1], axis=1)   # [B,5,N]

    # augmented sample slab: [-2x, -2y, -2z, ||x||^2, 1]
    x2t = jnp.transpose(xyz2, (0, 2, 1)).astype(jnp.float32)         # [B,S,3]
    sq2 = jnp.sum(x2t * x2t, axis=-1, keepdims=True)
    x2aug = jnp.concatenate([-2.0 * x2t, sq2, jnp.ones_like(sq2)],
                            axis=-1)                                  # [B,S,5]

    pid1 = piece_id1.astype(jnp.int32)[:, None, :]                    # [B,1,N]
    pid2 = piece_id2.astype(jnp.int32)[:, :, None]                    # [B,S,1]

    # Layer 0 split: points1 branch (W0a) + interpolation branch folded into
    # M0 = W0b^T @ points2 (stays f32: it multiplies the knn weights).
    w0 = folded_ws[0].astype(jnp.float32)                             # (D1+D,H0)
    w0a = jnp.transpose(w0[:D1]).astype(mlp_dtype)                    # (H0, D1)
    m0 = jnp.einsum('dh,bds->bhs', w0[D1:],
                    points2.astype(jnp.float32))                      # [B,H0,S]
    b0 = folded_bs[0].reshape(-1, 1).astype(jnp.float32)

    weight_args = [w0a, b0]
    for wl, bl in zip(folded_ws[1:], folded_bs[1:]):
        weight_args += [jnp.transpose(wl).astype(mlp_dtype),
                        bl.reshape(-1, 1).astype(jnp.float32)]

    pts1 = points1.astype(mlp_dtype)                                  # [B,D1,N]

    in_specs = [
        pl.BlockSpec((1, 5, tile_n), lambda b, i: (b, 0, i)),    # x1aug
        pl.BlockSpec((1, 1, tile_n), lambda b, i: (b, 0, i)),    # piece_id1
        pl.BlockSpec((1, S, 5), lambda b, i: (b, 0, 0)),         # x2aug
        pl.BlockSpec((1, S, 1), lambda b, i: (b, 0, 0)),         # piece_id2
        pl.BlockSpec((1, h0, S), lambda b, i: (b, 0, 0)),        # M0
        pl.BlockSpec((1, D1, tile_n), lambda b, i: (b, 0, i)),   # points1
    ] + [pl.BlockSpec(wa.shape, lambda b, i: (0, 0)) for wa in weight_args]

    out = pl.pallas_call(
        functools.partial(_fp_dynamic_kernel, num_layers, n_strips, strip_w),
        out_shape=jax.ShapeDtypeStruct((B, h_last, N), jnp.float32),
        grid=(B, N // tile_n),
        in_specs=in_specs,
        out_specs=pl.BlockSpec((1, h_last, tile_n), lambda b, i: (b, 0, i)),
        scratch_shapes=[pltpu.VMEM((h0, tile_n), jnp.float32)],
        compiler_params=pltpu.CompilerParams(
            dimension_semantics=("parallel", "parallel")),
    )(x1aug, pid1, x2aug, pid2, m0, pts1, *weight_args)

    return out   # [B, C_last, N] -- PyTorch NCW convention


def init_params(key, in_channel, mlp, eps=1e-5):
    """Deterministic Conv1d(k=1) + BatchNorm1d(eval) params, BN folded into W/b."""
    ws, bs = [], []
    last = in_channel
    for out_c in mlp:
        key, k1, k2, k3, k4 = jax.random.split(key, 5)
        w = 0.1 * jax.random.normal(k1, (last, out_c), jnp.float32)   # [C_in,C_out]
        b = 0.1 * jax.random.normal(k2, (out_c,), jnp.float32)
        gamma = 1.0 + 0.1 * jax.random.normal(k3, (out_c,), jnp.float32)
        beta = 0.1 * jax.random.normal(k4, (out_c,), jnp.float32)
        running_mean = jnp.zeros((out_c,), jnp.float32)
        running_var = jnp.ones((out_c,), jnp.float32)
        scale = gamma / jnp.sqrt(running_var + eps)
        ws.append(w * scale[None, :])
        bs.append((b - running_mean) * scale + beta)
        last = out_c
    return ws, bs


def reference(xyz1, xyz2, piece_id1, piece_id2, points1, points2, ws, bs):
    x1 = jnp.transpose(xyz1, (0, 2, 1))   # [B,N,3]
    x2 = jnp.transpose(xyz2, (0, 2, 1))   # [B,S,3]
    p2f = jnp.transpose(points2, (0, 2, 1))
    p1f = jnp.transpose(points1, (0, 2, 1))
    # same expanded distance form as the torch code
    d = (jnp.sum(x1 * x1, -1)[:, :, None] + jnp.sum(x2 * x2, -1)[:, None, :]
         - 2.0 * jnp.einsum('bnc,bsc->bns', x1, x2))
    d = jnp.where(piece_id1[:, :, None] != piece_id2[:, None, :], 1e8, d)
    neg_top, idx = jax.lax.top_k(-d, 3)
    recip = 1.0 / (-neg_top + 1e-8)
    wgt = recip / jnp.sum(recip, axis=-1, keepdims=True)
    gathered = jax.vmap(lambda pf, id3: pf[id3])(p2f, idx)   # [B,N,3,D]
    interp = jnp.sum(gathered * wgt[..., None], axis=2)
    x = jnp.concatenate([p1f, interp], axis=-1)
    for w, b in zip(ws, bs):
        x = jnp.maximum(x @ w + b, 0.0)
    return jnp.transpose(x, (0, 2, 1))


if __name__ == "__main__":
    key = jax.random.PRNGKey(0)
    B, N, S, D1, D = 2, 512, 128, 16, 16
    mlp = [32, 32]
    in_channel = D1 + D

    k = jax.random.split(key, 7)
    xyz1 = jax.random.normal(k[0], (B, 3, N), jnp.float32)
    xyz2 = jax.random.normal(k[1], (B, 3, S), jnp.float32)
    piece_id1 = jax.random.randint(k[2], (B, N), 0, 4, jnp.int32)
    piece_id2 = jax.random.randint(k[3], (B, S), 0, 4, jnp.int32)
    points1 = jax.random.normal(k[4], (B, D1, N), jnp.float32)
    points2 = jax.random.normal(k[5], (B, D, S), jnp.float32)
    ws, bs = init_params(k[6], in_channel, mlp)

    ref = reference(xyz1, xyz2, piece_id1, piece_id2, points1, points2, ws, bs)

    # full-f32 path: tight check against the reference
    out_f32 = pointnet_fp_dynamic(xyz1, xyz2, piece_id1, piece_id2,
                                  points1, points2, ws, bs,
                                  mlp_dtype=jnp.float32)
    out_f32 = jax.block_until_ready(out_f32)
    assert out_f32.shape == (B, mlp[-1], N), out_f32.shape
    assert jnp.allclose(out_f32, ref, atol=5e-4, rtol=5e-4), \
        float(jnp.max(jnp.abs(out_f32 - ref)))

    # default fast path: bf16 MLP weights/activations, f32 MXU accumulation
    out_bf16 = pointnet_fp_dynamic(xyz1, xyz2, piece_id1, piece_id2,
                                   points1, points2, ws, bs)
    out_bf16 = jax.block_until_ready(out_bf16)
    assert out_bf16.shape == (B, mlp[-1], N), out_bf16.shape
    assert jnp.allclose(out_bf16, ref, atol=5e-2, rtol=5e-2), \
        float(jnp.max(jnp.abs(out_bf16 - ref)))

    print("KERNEL_OK")
</pallas_src>

<mosaic_0001>
module attributes {stable_mosaic.version = 11 : i64} {
  func.func @_fp_dynamic_kernel(%arg0: i32, %arg1: i32, %arg2: memref<1x5x512xf32, #tpu.memory_space<vmem>>, %arg3: memref<1x1x512xi32, #tpu.memory_space<vmem>>, %arg4: memref<1x128x5xf32, #tpu.memory_space<vmem>>, %arg5: memref<1x128x1xi32, #tpu.memory_space<vmem>>, %arg6: memref<1x32x128xf32, #tpu.memory_space<vmem>>, %arg7: memref<1x16x512xf32, #tpu.memory_space<vmem>>, %arg8: memref<32x16xf32, #tpu.memory_space<vmem>>, %arg9: memref<32x1xf32, #tpu.memory_space<vmem>>, %arg10: memref<32x32xf32, #tpu.memory_space<vmem>>, %arg11: memref<32x1xf32, #tpu.memory_space<vmem>>, %arg12: memref<1x32x512xf32, #tpu.memory_space<vmem>>, %arg13: memref<32x512xf32, #tpu.memory_space<vmem>>) attributes {dimension_semantics = [#tpu.dimension_semantics<parallel>, #tpu.dimension_semantics<parallel>], iteration_bounds = array<i64: 2, 1>, scalar_prefetch = 0 : i64, scratch_operands = 1 : i64, tpu.core_type = #tpu.core_type<tc>, window_params = [{transform_indices = @transform_0, window_bounds = array<i64: 1, 5, 512>}, {transform_indices = @transform_1, window_bounds = array<i64: 1, 1, 512>}, {transform_indices = @transform_2, window_bounds = array<i64: 1, 128, 5>}, {transform_indices = @transform_3, window_bounds = array<i64: 1, 128, 1>}, {transform_indices = @transform_4, window_bounds = array<i64: 1, 32, 128>}, {transform_indices = @transform_5, window_bounds = array<i64: 1, 16, 512>}, {pipeline_mode = #tpu.pipeline_mode<synchronous>, transform_indices = @transform_6, window_bounds = array<i64: 32, 16>}, {pipeline_mode = #tpu.pipeline_mode<synchronous>, transform_indices = @transform_7, window_bounds = array<i64: 32, 1>}, {pipeline_mode = #tpu.pipeline_mode<synchronous>, transform_indices = @transform_8, window_bounds = array<i64: 32, 32>}, {pipeline_mode = #tpu.pipeline_mode<synchronous>, transform_indices = @transform_9, window_bounds = array<i64: 32, 1>}, {transform_indices = @transform_10, window_bounds = array<i64: 1, 32, 512>}]} {
    %c0_i32 = arith.constant 0 : i32
    %c4_i32 = arith.constant 4 : i32
    %0 = arith.addi %c0_i32, %c4_i32 : i32
    %c1_i32 = arith.constant 1 : i32
    scf.for %arg14 = %c0_i32 to %0 step %c1_i32  : i32 {
      %c128_i32 = arith.constant 128 : i32
      %22 = arith.muli %arg14, %c128_i32 : i32
      %23 = tpu.assume_multiple %22, 128 : i32
      %c0_19 = arith.constant 0 : index
      %c0_20 = arith.constant 0 : index
      %c0_21 = arith.constant 0 : index
      %24 = vector.load %arg4[%c0_19, %c0_20, %c0_21] : memref<1x128x5xf32, #tpu.memory_space<vmem>>, vector<1x128x5xf32>
      %25 = vector.shape_cast %24 : vector<1x128x5xf32> to vector<128x5xf32>
      %c0_22 = arith.constant 0 : index
      %c0_23 = arith.constant 0 : index
      %c0_24 = arith.constant 0 : index
      %26 = vector.load %arg5[%c0_22, %c0_23, %c0_24] : memref<1x128x1xi32, #tpu.memory_space<vmem>>, vector<1x128x1xi32>
      %27 = vector.shape_cast %26 : vector<1x128x1xi32> to vector<128x1xi32>
      %c0_25 = arith.constant 0 : index
      %c0_26 = arith.constant 0 : index
      %c0_27 = arith.constant 0 : index
      %28 = vector.load %arg6[%c0_25, %c0_26, %c0_27] : memref<1x32x128xf32, #tpu.memory_space<vmem>>, vector<1x32x128xf32>
      %29 = vector.shape_cast %28 : vector<1x32x128xf32> to vector<32x128xf32>
      %c0_28 = arith.constant 0 : index
      %c0_29 = arith.constant 0 : index
      %30 = arith.index_cast %23 : i32 to index
      %31 = vector.load %arg2[%c0_28, %c0_29, %30] : memref<1x5x512xf32, #tpu.memory_space<vmem>>, vector<1x5x128xf32>
      %32 = vector.shape_cast %31 : vector<1x5x128xf32> to vector<5x128xf32>
      %c0_30 = arith.constant 0 : index
      %c0_31 = arith.constant 0 : index
      %33 = arith.index_cast %23 : i32 to index
      %34 = vector.load %arg3[%c0_30, %c0_31, %33] : memref<1x1x512xi32, #tpu.memory_space<vmem>>, vector<1x1x128xi32>
      %35 = vector.shape_cast %34 : vector<1x1x128xi32> to vector<1x128xi32>
      %cst_32 = arith.constant dense<0.000000e+00> : vector<128x128xf32>
      %36 = tpu.matmul %25, %32, %cst_32 {dimension_numbers = #tpu.dot_dimension_numbers<[1], [0], [0], [1], [0, 0, 1, 1], [], []>} : vector<128x5xf32>, vector<5x128xf32>, vector<128x128xf32> -> vector<128x128xf32>
      %37 = vector.broadcast %27 : vector<128x1xi32> to vector<128x128xi32>
      %38 = vector.broadcast %35 : vector<1x128xi32> to vector<128x128xi32>
      %39 = arith.cmpi ne, %37, %38 : vector<128x128xi32>
      %cst_33 = arith.constant 1.000000e+08 : f32
      %40 = vector.broadcast %cst_33 : f32 to vector<128x128xf32>
      %41 = arith.select %39, %40, %36 : vector<128x128xi1>, vector<128x128xf32>
      %cst_34 = arith.constant 0.000000e+00 : f32
      %42 = vector.broadcast %cst_34 : f32 to vector<128x128xf32>
      %cst_35 = arith.constant 0.000000e+00 : f32
      %43 = vector.broadcast %cst_35 : f32 to vector<1x128xf32>
      %cst_36 = arith.constant dense<0x7F800000> : vector<128xf32>
      %44 = vector.multi_reduction <minimumf>, %41, %cst_36 [0] : vector<128x128xf32> to vector<128xf32>
      %45 = vector.shape_cast %44 : vector<128xf32> to vector<1x128xf32>
      %46 = vector.broadcast %45 : vector<1x128xf32> to vector<128x128xf32>
      %47 = arith.cmpf oeq, %41, %46 : vector<128x128xf32>
      %cst_37 = arith.constant 9.99999993E-9 : f32
      %48 = vector.broadcast %cst_37 : f32 to vector<1x128xf32>
      %49 = arith.addf %45, %48 : vector<1x128xf32>
      %50 = tpu.reciprocal %49 : vector<1x128xf32> -> vector<1x128xf32>
      %cst_38 = arith.constant 0.000000e+00 : f32
      %51 = vector.shape_cast %50 : vector<1x128xf32> to vector<1x128xf32>
      %52 = vector.broadcast %51 : vector<1x128xf32> to vector<128x128xf32>
      %53 = vector.broadcast %cst_38 : f32 to vector<128x128xf32>
      %54 = arith.select %47, %52, %53 : vector<128x128xi1>, vector<128x128xf32>
      %55 = arith.addf %42, %54 : vector<128x128xf32>
      %56 = arith.addf %43, %50 : vector<1x128xf32>
      %cst_39 = arith.constant 3.000000e+38 : f32
      %57 = vector.broadcast %cst_39 : f32 to vector<128x128xf32>
      %58 = arith.select %47, %57, %41 : vector<128x128xi1>, vector<128x128xf32>
      %cst_40 = arith.constant dense<0x7F800000> : vector<128xf32>
      %59 = vector.multi_reduction <minimumf>, %58, %cst_40 [0] : vector<128x128xf32> to vector<128xf32>
      %60 = vector.shape_cast %59 : vector<128xf32> to vector<1x128xf32>
      %61 = vector.broadcast %60 : vector<1x128xf32> to vector<128x128xf32>
      %62 = arith.cmpf oeq, %58, %61 : vector<128x128xf32>
      %cst_41 = arith.constant 9.99999993E-9 : f32
      %63 = vector.broadcast %cst_41 : f32 to vector<1x128xf32>
      %64 = arith.addf %60, %63 : vector<1x128xf32>
      %65 = tpu.reciprocal %64 : vector<1x128xf32> -> vector<1x128xf32>
      %cst_42 = arith.constant 0.000000e+00 : f32
      %66 = vector.shape_cast %65 : vector<1x128xf32> to vector<1x128xf32>
      %67 = vector.broadcast %66 : vector<1x128xf32> to vector<128x128xf32>
      %68 = vector.broadcast %cst_42 : f32 to vector<128x128xf32>
      %69 = arith.select %62, %67, %68 : vector<128x128xi1>, vector<128x128xf32>
      %70 = arith.addf %55, %69 : vector<128x128xf32>
      %71 = arith.addf %56, %65 : vector<1x128xf32>
      %cst_43 = arith.constant 3.000000e+38 : f32
      %72 = vector.broadcast %cst_43 : f32 to vector<128x128xf32>
      %73 = arith.select %62, %72, %58 : vector<128x128xi1>, vector<128x128xf32>
      %cst_44 = arith.constant dense<0x7F800000> : vector<128xf32>
      %74 = vector.multi_reduction <minimumf>, %73, %cst_44 [0] : vector<128x128xf32> to vector<128xf32>
      %75 = vector.shape_cast %74 : vector<128xf32> to vector<1x128xf32>
      %76 = vector.broadcast %75 : vector<1x128xf32> to vector<128x128xf32>
      %77 = arith.cmpf oeq, %73, %76 : vector<128x128xf32>
      %cst_45 = arith.constant 9.99999993E-9 : f32
      %78 = vector.broadcast %cst_45 : f32 to vector<1x128xf32>
      %79 = arith.addf %75, %78 : vector<1x128xf32>
      %80 = tpu.reciprocal %79 : vector<1x128xf32> -> vector<1x128xf32>
      %cst_46 = arith.constant 0.000000e+00 : f32
      %81 = vector.shape_cast %80 : vector<1x128xf32> to vector<1x128xf32>
      %82 = vector.broadcast %81 : vector<1x128xf32> to vector<128x128xf32>
      %83 = vector.broadcast %cst_46 : f32 to vector<128x128xf32>
      %84 = arith.select %77, %82, %83 : vector<128x128xi1>, vector<128x128xf32>
      %85 = arith.addf %70, %84 : vector<128x128xf32>
      %86 = arith.addf %71, %80 : vector<1x128xf32>
      %cst_47 = arith.constant dense<0.000000e+00> : vector<32x128xf32>
      %87 = tpu.matmul %29, %85, %cst_47 {dimension_numbers = #tpu.dot_dimension_numbers<[1], [0], [0], [1], [0, 0, 1, 1], [], []>} : vector<32x128xf32>, vector<128x128xf32>, vector<32x128xf32> -> vector<32x128xf32>
      %88 = tpu.reciprocal %86 : vector<1x128xf32> -> vector<1x128xf32>
      %89 = vector.broadcast %88 : vector<1x128xf32> to vector<32x128xf32>
      %90 = arith.mulf %87, %89 : vector<32x128xf32>
      %c0_48 = arith.constant 0 : index
      %91 = arith.index_cast %23 : i32 to index
      %92 = vector.load %arg13[%c0_48, %91] : memref<32x512xf32, #tpu.memory_space<vmem>>, vector<32x128xf32>
      tpu.vector_store %arg13[%c0_48, %91], %90 {strides = array<i32>} : memref<32x512xf32, #tpu.memory_space<vmem>>, vector<32x128xf32>,
    }
    %c4_i32_0 = arith.constant 4 : i32
    %c0 = arith.constant 0 : index
    %c0_1 = arith.constant 0 : index
    %1 = vector.load %arg8[%c0, %c0_1] : memref<32x16xf32, #tpu.memory_space<vmem>>, vector<32x16xf32>
    %c0_2 = arith.constant 0 : index
    %c0_3 = arith.constant 0 : index
    %2 = vector.load %arg9[%c0_2, %c0_3] : memref<32x1xf32, #tpu.memory_space<vmem>>, vector<32x1xf32>
    %c0_4 = arith.constant 0 : index
    %c0_5 = arith.constant 0 : index
    %c0_6 = arith.constant 0 : index
    %3 = vector.load %arg7[%c0_4, %c0_5, %c0_6] : memref<1x16x512xf32, #tpu.memory_space<vmem>>, vector<1x16x512xf32>
    %4 = vector.shape_cast %3 : vector<1x16x512xf32> to vector<16x512xf32>
    %cst = arith.constant dense<0.000000e+00> : vector<32x512xf32>
    %5 = tpu.matmul %1, %4, %cst {dimension_numbers = #tpu.dot_dimension_numbers<[1], [0], [0], [1], [0, 0, 1, 1], [], []>} : vector<32x16xf32>, vector<16x512xf32>, vector<32x512xf32> -> vector<32x512xf32>
    %c0_7 = arith.constant 0 : index
    %c0_8 = arith.constant 0 : index
    %6 = vector.load %arg13[%c0_7, %c0_8] : memref<32x512xf32, #tpu.memory_space<vmem>>, vector<32x512xf32>
    %7 = arith.addf %5, %6 : vector<32x512xf32>
    %8 = vector.broadcast %2 : vector<32x1xf32> to vector<32x512xf32>
    %9 = arith.addf %7, %8 : vector<32x512xf32>
    %cst_9 = arith.constant 0.000000e+00 : f32
    %10 = vector.broadcast %cst_9 : f32 to vector<32x512xf32>
    %11 = arith.maximumf %9, %10 : vector<32x512xf32>
    %c0_10 = arith.constant 0 : index
    %c0_11 = arith.constant 0 : index
    %12 = vector.load %arg10[%c0_10, %c0_11] : memref<32x32xf32, #tpu.memory_space<vmem>>, vector<32x32xf32>
    %c0_12 = arith.constant 0 : index
    %c0_13 = arith.constant 0 : index
    %13 = vector.load %arg11[%c0_12, %c0_13] : memref<32x1xf32, #tpu.memory_space<vmem>>, vector<32x1xf32>
    %cst_14 = arith.constant dense<0.000000e+00> : vector<32x512xf32>
    %14 = tpu.matmul %12, %11, %cst_14 {dimension_numbers = #tpu.dot_dimension_numbers<[1], [0], [0], [1], [0, 0, 1, 1], [], []>} : vector<32x32xf32>, vector<32x512xf32>, vector<32x512xf32> -> vector<32x512xf32>
    %15 = vector.broadcast %13 : vector<32x1xf32> to vector<32x512xf32>
    %16 = arith.addf %14, %15 : vector<32x512xf32>
    %cst_15 = arith.constant 0.000000e+00 : f32
    %17 = vector.broadcast %cst_15 : f32 to vector<32x512xf32>
    %18 = arith.maximumf %16, %17 : vector<32x512xf32>
    %c0_16 = arith.constant 0 : index
    %c0_17 = arith.constant 0 : index
    %c0_18 = arith.constant 0 : index
    %19 = vector.load %arg12[%c0_16, %c0_17, %c0_18] : memref<1x32x512xf32, #tpu.memory_space<vmem>>, vector<1x32x512xf32>
    %20 = vector.shape_cast %19 : vector<1x32x512xf32> to vector<32x512xf32>
    %21 = vector.shape_cast %18 : vector<32x512xf32> to vector<1x32x512xf32>
    tpu.vector_store %arg12[%c0_16, %c0_17, %c0_18], %21 {strides = array<i32>} : memref<1x32x512xf32, #tpu.memory_space<vmem>>, vector<1x32x512xf32>,
    return
  }
  func.func @transform_0(%arg0: i32, %arg1: i32) -> (i32, i32, i32) {
    %c0_i32 = arith.constant 0 : i32
    %c0_i32_0 = arith.constant 0 : i32
    return %arg0, %c0_i32, %arg1 : i32, i32, i32
  }
  func.func @transform_1(%arg0: i32, %arg1: i32) -> (i32, i32, i32) {
    %c0_i32 = arith.constant 0 : i32
    %c0_i32_0 = arith.constant 0 : i32
    return %arg0, %c0_i32, %arg1 : i32, i32, i32
  }
  func.func @transform_2(%arg0: i32, %arg1: i32) -> (i32, i32, i32) {
    %c0_i32 = arith.constant 0 : i32
    %c0_i32_0 = arith.constant 0 : i32
    %c0_i32_1 = arith.constant 0 : i32
    return %arg0, %c0_i32, %c0_i32_0 : i32, i32, i32
  }
  func.func @transform_3(%arg0: i32, %arg1: i32) -> (i32, i32, i32) {
    %c0_i32 = arith.constant 0 : i32
    %c0_i32_0 = arith.constant 0 : i32
    %c0_i32_1 = arith.constant 0 : i32
    return %arg0, %c0_i32, %c0_i32_0 : i32, i32, i32
  }
  func.func @transform_4(%arg0: i32, %arg1: i32) -> (i32, i32, i32) {
    %c0_i32 = arith.constant 0 : i32
    %c0_i32_0 = arith.constant 0 : i32
    %c0_i32_1 = arith.constant 0 : i32
    return %arg0, %c0_i32, %c0_i32_0 : i32, i32, i32
  }
  func.func @transform_5(%arg0: i32, %arg1: i32) -> (i32, i32, i32) {
    %c0_i32 = arith.constant 0 : i32
    %c0_i32_0 = arith.constant 0 : i32
    return %arg0, %c0_i32, %arg1 : i32, i32, i32
  }
  func.func @transform_6(%arg0: i32, %arg1: i32) -> (i32, i32) {
    %c0_i32 = arith.constant 0 : i32
    %c0_i32_0 = arith.constant 0 : i32
    %c0_i32_1 = arith.constant 0 : i32
    return %c0_i32, %c0_i32_0 : i32, i32
  }
  func.func @transform_7(%arg0: i32, %arg1: i32) -> (i32, i32) {
    %c0_i32 = arith.constant 0 : i32
    %c0_i32_0 = arith.constant 0 : i32
    %c0_i32_1 = arith.constant 0 : i32
    return %c0_i32, %c0_i32_0 : i32, i32
  }
  func.func @transform_8(%arg0: i32, %arg1: i32) -> (i32, i32) {
    %c0_i32 = arith.constant 0 : i32
    %c0_i32_0 = arith.constant 0 : i32
    %c0_i32_1 = arith.constant 0 : i32
    return %c0_i32, %c0_i32_0 : i32, i32
  }
  func.func @transform_9(%arg0: i32, %arg1: i32) -> (i32, i32) {
    %c0_i32 = arith.constant 0 : i32
    %c0_i32_0 = arith.constant 0 : i32
    %c0_i32_1 = arith.constant 0 : i32
    return %c0_i32, %c0_i32_0 : i32, i32
  }
  func.func @transform_10(%arg0: i32, %arg1: i32) -> (i32, i32, i32) {
    %c0_i32 = arith.constant 0 : i32
    %c0_i32_0 = arith.constant 0 : i32
    return %arg0, %c0_i32, %arg1 : i32, i32, i32
  }
}

</mosaic_0001>

<llo_original>
// kernel: tpu_custom_call.1
$region0: #{tpu_custom_call.1}
  #allocation0 [shape = 'u32[]', space=smem, size = 0x4, offset = 0x4, fixed_abs, tag = 'smem constant byte address 0x4 - core index']
  #allocation1 [shape = 'u32[144,128]{1,0:T(1,128)}', space=vmem, size = 0x12000, scoped, tag = 'internal scratch']
  #allocation2 [shape = 'f32[32,512]{1,0:T(8,128)}', space=vmem, size = 0x10000, scoped, tag = 'scratch operand']
  %s0 = inlined_call_operand.vmem [shape: f32[2,5,512], index: 0, kind: input, shape index: {}]
  %s1 = inlined_call_operand.vmem [shape: s32[2,1,512], index: 1, kind: input, shape index: {}]
  %s2 = inlined_call_operand.vmem [shape: f32[2,128,5], index: 2, kind: input, shape index: {}]
  %s3 = inlined_call_operand.vmem [shape: s32[2,128,1], index: 3, kind: input, shape index: {}]
  %s4 = inlined_call_operand.vmem [shape: f32[2,32,128], index: 4, kind: input, shape index: {}]
  %s5 = inlined_call_operand.vmem [shape: f32[2,16,512], index: 5, kind: input, shape index: {}]
  %s6 = inlined_call_operand.vmem [shape: f32[32,16], index: 6, kind: input, shape index: {}]
  %s7 = inlined_call_operand.vmem [shape: f32[32,1], index: 7, kind: input, shape index: {}]
  %s8 = inlined_call_operand.vmem [shape: f32[32,32], index: 8, kind: input, shape index: {}]
  %s9 = inlined_call_operand.vmem [shape: f32[32,1], index: 9, kind: input, shape index: {}]
  %s10 = inlined_call_operand.hbm [shape: f32[2,32,512], index: 10, kind: output, shape index: {}]
  %s11 = sld [smem:[#allocation0]]
  $region80: #{tpu_custom_call.1} parent=0
    _
  %s13 = ssub.s32 1, %s11
  %s14 = scalar_select 0, %s13, %s11
  $region1: #{tpu_custom_call.1} parent=0
    #allocation3 [shape = 'u8[131072]{0}', space=vmem, size = 0x20000, scoped, tag = 'output window, operand 0']
    #allocation4 [shape = 's32[2]{0}', space=sflag, size = 0x8, scoped, tag = 'scoped memory for tpu_custom_call.1']
    %15 = vsyncpa [#allocation4], 0
    %s16 = scalar_lea.sflag [#allocation4], 1
    %17 = vsyncpa %s16, 0
    loop: start=0, step=1, limit=4
    $region2: #{tpu_custom_call.1} parent=1 // loop_pre_header
      _
    $region3: #{tpu_custom_call.1} parent=1 // loop_header
      %s19 = sphi 0, %s23
      %p20 = scmp.ge.s32.totalorder %s19, 4
      %s26 = sphi 0, %s38
      %s27 = sphi 0, %s34
      %s28 = sphi 0, %s26
      %s29 = sphi 0, %s27
      %s30 = sphi 0, %s28
      %s31 = sphi 0, %s29
      %s43 = sphi 0, %s45
      %s46 = sphi 0, %s43
      %s47 = sphi 0, %s46
      %s63 = sphi 0, %s47
      %s71 = sphi 0, %s73
      %s74 = sphi 0, %s71
      %s75 = sphi 0, %s74
      %s91 = sphi 0, %s75
      %s97 = sphi 0, %s99
      %s100 = sphi 0, %s97
      %s101 = sphi 0, %s100
      %s117 = sphi 0, %s101
      %s123 = sphi 0, %s125
      %s126 = sphi 0, %s123
      %s127 = sphi 0, %s126
      %s143 = sphi 0, %s127
      %s149 = sphi 0, %s151
      %s152 = sphi 0, %s149
      %s153 = sphi 0, %s152
      %s169 = sphi 0, %s153
      %s177 = sphi 0, %s179
      %s180 = sphi 0, %s177
      %s181 = sphi 0, %s180
      %s197 = sphi 0, %s181
      %s201 = sphi 0, %s201
      %s203 = sphi 0, %s201
      %s204 = sphi 0, %s203
      %s218 = sphi 0, %s204
      %s222 = sphi 0, %s222
      %s224 = sphi 0, %s222
      %s225 = sphi 0, %s224
      %s239 = sphi 0, %s225
      %s243 = sphi 0, %s243
      %s245 = sphi 0, %s243
      %s246 = sphi 0, %s245
      %s260 = sphi 0, %s246
      %s264 = sphi 0, %s264
      %s266 = sphi 0, %s264
      %s267 = sphi 0, %s266
      %s281 = sphi 0, %s267
      %s289 = sphi 0, %s291
      %s292 = sphi 0, %s289
      %s293 = sphi 0, %s292
      %s309 = sphi 0, %s293
    $region4: #{tpu_custom_call.1} parent=1 // loop_header_branch
      %22 = sbr.rel (%p20) target = $region8
    $region5: #{tpu_custom_call.1} parent=1 // loop_body
      %s24 = ssub.s32 %s19, 1
      %s25 = ssub.s32 %s19, 2
      %s32 = sadd.s32 1, %s27
      %p33 = scmp.ge.s32.totalorder %s32, 1
      %s34 = scalar_select %p33, 0, %s32
      %s35 = sadd.s32 1, %s26
      %s36 = scalar_select %p33, %s35, %s26
      %p37 = scmp.ge.s32.totalorder %s36, 2
      %s38 = scalar_select %p37, 0, %s36
      %s39 = ssub.s32 %s26, %s38
      %s40 = ssub.s32 %s27, %s34
      %s41 = sor.u32 %s39, %s40
      %p42 = scmp.eq.s32.totalorder %s41, 0
      %s44 = sadd.s32 %s43, 1
      %s45 = scalar_select %p42, %s43, %s44
      %p48 = pneg %p42
      %p49 = scmp.eq.s32.totalorder %s19, 1
      %p50 = por %p48, %p49
      %p51 = scmp.ne.s32.totalorder %s43, %s46
      %p52 = scmp.eq.s32.totalorder %s19, 0
      %p53 = por %p51, %p52
      %p54 = scmp.ne.s32.totalorder %s43, %s46
      %p55 = scmp.eq.s32.totalorder %s24, 1
      %p56 = por %p54, %p55
      %p57 = scmp.ne.s32.totalorder %s46, %s47
      %p58 = scmp.eq.s32.totalorder %s24, 0
      %p59 = por %p57, %p58
      %p60 = scmp.ne.s32.totalorder %s46, %s47
      %p61 = scmp.eq.s32.totalorder %s25, 1
      %p62 = por %p60, %p61
      %p64 = scmp.ne.s32.totalorder %s47, %s63
      %p65 = scmp.eq.s32.totalorder %s25, 0
      %p66 = por %p64, %p65
      %s67 = ssub.s32 %s26, %s38
      %s68 = ssub.s32 %s27, %s34
      %s69 = sor.u32 %s67, %s68
      %p70 = scmp.eq.s32.totalorder %s69, 0
      %s72 = sadd.s32 %s71, 1
      %s73 = scalar_select %p70, %s71, %s72
      %p76 = pneg %p70
      %p77 = scmp.eq.s32.totalorder %s19, 1
      %p78 = por %p76, %p77
      %p79 = scmp.ne.s32.totalorder %s71, %s74
      %p80 = scmp.eq.s32.totalorder %s19, 0
      %p81 = por %p79, %p80
      %p82 = scmp.ne.s32.totalorder %s71, %s74
      %p83 = scmp.eq.s32.totalorder %s24, 1
      %p84 = por %p82, %p83
      %p85 = scmp.ne.s32.totalorder %s74, %s75
      %p86 = scmp.eq.s32.totalorder %s24, 0
      %p87 = por %p85, %p86
      %p88 = scmp.ne.s32.totalorder %s74, %s75
      %p89 = scmp.eq.s32.totalorder %s25, 1
      %p90 = por %p88, %p89
      %p92 = scmp.ne.s32.totalorder %s75, %s91
      %p93 = scmp.eq.s32.totalorder %s25, 0
      %p94 = por %p92, %p93
      %s95 = ssub.s32 %s26, %s38
      %p96 = scmp.eq.s32.totalorder %s95, 0
      %s98 = sadd.s32 %s97, 1
      %s99 = scalar_select %p96, %s97, %s98
      %p102 = pneg %p96
      %p103 = scmp.eq.s32.totalorder %s19, 1
      %p104 = por %p102, %p103
      %p105 = scmp.ne.s32.totalorder %s97, %s100
      %p106 = scmp.eq.s32.totalorder %s19, 0
      %p107 = por %p105, %p106
      %p108 = scmp.ne.s32.totalorder %s97, %s100
      %p109 = scmp.eq.s32.totalorder %s24, 1
      %p110 = por %p108, %p109
      %p111 = scmp.ne.s32.totalorder %s100, %s101
      %p112 = scmp.eq.s32.totalorder %s24, 0
      %p113 = por %p111, %p112
      %p114 = scmp.ne.s32.totalorder %s100, %s101
      %p115 = scmp.eq.s32.totalorder %s25, 1
      %p116 = por %p114, %p115
      %p118 = scmp.ne.s32.totalorder %s101, %s117
      %p119 = scmp.eq.s32.totalorder %s25, 0
      %p120 = por %p118, %p119
      %s121 = ssub.s32 %s26, %s38
      %p122 = scmp.eq.s32.totalorder %s121, 0
      %s124 = sadd.s32 %s123, 1
      %s125 = scalar_select %p122, %s123, %s124
      %p128 = pneg %p122
      %p129 = scmp.eq.s32.totalorder %s19, 1
      %p130 = por %p128, %p129
      %p131 = scmp.ne.s32.totalorder %s123, %s126
      %p132 = scmp.eq.s32.totalorder %s19, 0
      %p133 = por %p131, %p132
      %p134 = scmp.ne.s32.totalorder %s123, %s126
      %p135 = scmp.eq.s32.totalorder %s24, 1
      %p136 = por %p134, %p135
      %p137 = scmp.ne.s32.totalorder %s126, %s127
      %p138 = scmp.eq.s32.totalorder %s24, 0
      %p139 = por %p137, %p138
      %p140 = scmp.ne.s32.totalorder %s126, %s127
      %p141 = scmp.eq.s32.totalorder %s25, 1
      %p142 = por %p140, %p141
      %p144 = scmp.ne.s32.totalorder %s127, %s143
      %p145 = scmp.eq.s32.totalorder %s25, 0
      %p146 = por %p144, %p145
      %s147 = ssub.s32 %s26, %s38
      %p148 = scmp.eq.s32.totalorder %s147, 0
      %s150 = sadd.s32 %s149, 1
      %s151 = scalar_select %p148, %s149, %s150
      %p154 = pneg %p148
      %p155 = scmp.eq.s32.totalorder %s19, 1
      %p156 = por %p154, %p155
      %p157 = scmp.ne.s32.totalorder %s149, %s152
      %p158 = scmp.eq.s32.totalorder %s19, 0
      %p159 = por %p157, %p158
      %p160 = scmp.ne.s32.totalorder %s149, %s152
      %p161 = scmp.eq.s32.totalorder %s24, 1
      %p162 = por %p160, %p161
      %p163 = scmp.ne.s32.totalorder %s152, %s153
      %p164 = scmp.eq.s32.totalorder %s24, 0
      %p165 = por %p163, %p164
      %p166 = scmp.ne.s32.totalorder %s152, %s153
      %p167 = scmp.eq.s32.totalorder %s25, 1
      %p168 = por %p166, %p167
      %p170 = scmp.ne.s32.totalorder %s153, %s169
      %p171 = scmp.eq.s32.totalorder %s25, 0
      %p172 = por %p170, %p171
      %s173 = ssub.s32 %s26, %s38
      %s174 = ssub.s32 %s27, %s34
      %s175 = sor.u32 %s173, %s174
      %p176 = scmp.eq.s32.totalorder %s175, 0
      %s178 = sadd.s32 %s177, 1
      %s179 = scalar_select %p176, %s177, %s178
      %p182 = pneg %p176
      %p183 = scmp.eq.s32.totalorder %s19, 1
      %p184 = por %p182, %p183
      %p185 = scmp.ne.s32.totalorder %s177, %s180
      %p186 = scmp.eq.s32.totalorder %s19, 0
      %p187 = por %p185, %p186
      %p188 = scmp.ne.s32.totalorder %s177, %s180
      %p189 = scmp.eq.s32.totalorder %s24, 1
      %p190 = por %p188, %p189
      %p191 = scmp.ne.s32.totalorder %s180, %s181
      %p192 = scmp.eq.s32.totalorder %s24, 0
      %p193 = por %p191, %p192
      %p194 = scmp.ne.s32.totalorder %s180, %s181
      %p195 = scmp.eq.s32.totalorder %s25, 1
      %p196 = por %p194, %p195
      %p198 = scmp.ne.s32.totalorder %s181, %s197
      %p199 = scmp.eq.s32.totalorder %s25, 0
      %p200 = por %p198, %p199
      %s202 = sadd.s32 %s201, 1
      %p205 = scmp.eq.s32.totalorder %s19, 1
      %p206 = scmp.ne.s32.totalorder %s201, %s203
      %p207 = scmp.eq.s32.totalorder %s19, 0
      %p208 = por %p206, %p207
      %p209 = scmp.ne.s32.totalorder %s201, %s203
      %p210 = scmp.eq.s32.totalorder %s24, 1
      %p211 = por %p209, %p210
      %p212 = scmp.ne.s32.totalorder %s203, %s204
      %p213 = scmp.eq.s32.totalorder %s24, 0
      %p214 = por %p212, %p213
      %p215 = scmp.ne.s32.totalorder %s203, %s204
      %p216 = scmp.eq.s32.totalorder %s25, 1
      %p217 = por %p215, %p216
      %p219 = scmp.ne.s32.totalorder %s204, %s218
      %p220 = scmp.eq.s32.totalorder %s25, 0
      %p221 = por %p219, %p220
      %s223 = sadd.s32 %s222, 1
      %p226 = scmp.eq.s32.totalorder %s19, 1
      %p227 = scmp.ne.s32.totalorder %s222, %s224
      %p228 = scmp.eq.s32.totalorder %s19, 0
      %p229 = por %p227, %p228
      %p230 = scmp.ne.s32.totalorder %s222, %s224
      %p231 = scmp.eq.s32.totalorder %s24, 1
      %p232 = por %p230, %p231
      %p233 = scmp.ne.s32.totalorder %s224, %s225
      %p234 = scmp.eq.s32.totalorder %s24, 0
      %p235 = por %p233, %p234
      %p236 = scmp.ne.s32.totalorder %s224, %s225
      %p237 = scmp.eq.s32.totalorder %s25, 1
      %p238 = por %p236, %p237
      %p240 = scmp.ne.s32.totalorder %s225, %s239
      %p241 = scmp.eq.s32.totalorder %s25, 0
      %p242 = por %p240, %p241
      %s244 = sadd.s32 %s243, 1
      %p247 = scmp.eq.s32.totalorder %s19, 1
      %p248 = scmp.ne.s32.totalorder %s243, %s245
      %p249 = scmp.eq.s32.totalorder %s19, 0
      %p250 = por %p248, %p249
      %p251 = scmp.ne.s32.totalorder %s243, %s245
      %p252 = scmp.eq.s32.totalorder %s24, 1
      %p253 = por %p251, %p252
      %p254 = scmp.ne.s32.totalorder %s245, %s246
      %p255 = scmp.eq.s32.totalorder %s24, 0
      %p256 = por %p254, %p255
      %p257 = scmp.ne.s32.totalorder %s245, %s246
      %p258 = scmp.eq.s32.totalorder %s25, 1
      %p259 = por %p257, %p258
      %p261 = scmp.ne.s32.totalorder %s246, %s260
      %p262 = scmp.eq.s32.totalorder %s25, 0
      %p263 = por %p261, %p262
      %s265 = sadd.s32 %s264, 1
      %p268 = scmp.eq.s32.totalorder %s19, 1
      %p269 = scmp.ne.s32.totalorder %s264, %s266
      %p270 = scmp.eq.s32.totalorder %s19, 0
      %p271 = por %p269, %p270
      %p272 = scmp.ne.s32.totalorder %s264, %s266
      %p273 = scmp.eq.s32.totalorder %s24, 1
      %p274 = por %p272, %p273
      %p275 = scmp.ne.s32.totalorder %s266, %s267
      %p276 = scmp.eq.s32.totalorder %s24, 0
      %p277 = por %p275, %p276
      %p278 = scmp.ne.s32.totalorder %s266, %s267
      %p279 = scmp.eq.s32.totalorder %s25, 1
      %p280 = por %p278, %p279
      %p282 = scmp.ne.s32.totalorder %s267, %s281
      %p283 = scmp.eq.s32.totalorder %s25, 0
      %p284 = por %p282, %p283
      %s285 = ssub.s32 %s26, %s38
      %s286 = ssub.s32 %s27, %s34
      %s287 = sor.u32 %s285, %s286
      %p288 = scmp.eq.s32.totalorder %s287, 0
      %s290 = sadd.s32 %s289, 1
      %s291 = scalar_select %p288, %s289, %s290
      %p294 = pneg %p288
      %p295 = scmp.eq.s32.totalorder %s19, 1
      %p296 = por %p294, %p295
      %p297 = scmp.ne.s32.totalorder %s289, %s292
      %p298 = scmp.eq.s32.totalorder %s19, 0
      %p299 = por %p297, %p298
      %p300 = scmp.ne.s32.totalorder %s289, %s292
      %p301 = scmp.eq.s32.totalorder %s24, 1
      %p302 = por %p300, %p301
      %p303 = scmp.ne.s32.totalorder %s292, %s293
      %p304 = scmp.eq.s32.totalorder %s24, 0
      %p305 = por %p303, %p304
      %p306 = scmp.ne.s32.totalorder %s292, %s293
      %p307 = scmp.eq.s32.totalorder %s25, 1
      %p308 = por %p306, %p307
      %p310 = scmp.ne.s32.totalorder %s293, %s309
      %p311 = scmp.eq.s32.totalorder %s25, 0
      %p312 = por %p310, %p311
      %p313 = scmp.le.s32.totalorder 1, %s19
      %p314 = scmp.lt.s32.totalorder %s19, 3
      %p315 = pnand %p313, %p314
      %p316 = pneg %p315
      // Predicated region
      $region9: #{tpu_custom_call.1} parent=5 // pred_check
        _
      $region10: #{tpu_custom_call.1} parent=5 // pred_check_branch
        %318 = sbr.rel (%p315) target = $region12
      $region11: #{tpu_custom_call.1} parent=5 // pred_region
        %s319 = ssub.s32 %s19, 1
        // Predicated region
        $region13: #{tpu_custom_call.1} parent=11 // pred_check
          %p320 = pneg %p214
        $region14: #{tpu_custom_call.1} parent=11 // pred_check_branch
          %322 = sbr.rel (%p320) target = $region16
        $region15: #{tpu_custom_call.1} parent=11 // pred_region
          _
        $region16: #{tpu_custom_call.1} parent=11 // pred_fallthru
          _
        // Predicated region
        $region17: #{tpu_custom_call.1} parent=11 // pred_check
          %p323 = pneg %p235
        $region18: #{tpu_custom_call.1} parent=11 // pred_check_branch
          %325 = sbr.rel (%p323) target = $region20
        $region19: #{tpu_custom_call.1} parent=11 // pred_region
          _
        $region20: #{tpu_custom_call.1} parent=11 // pred_fallthru
          _
        // Predicated region
        $region21: #{tpu_custom_call.1} parent=11 // pred_check
          %p326 = pneg %p256
        $region22: #{tpu_custom_call.1} parent=11 // pred_check_branch
          %328 = sbr.rel (%p326) target = $region24
        $region23: #{tpu_custom_call.1} parent=11 // pred_region
          _
        $region24: #{tpu_custom_call.1} parent=11 // pred_fallthru
          _
        // Predicated region
        $region25: #{tpu_custom_call.1} parent=11 // pred_check
          %p329 = pneg %p277
        $region26: #{tpu_custom_call.1} parent=11 // pred_check_branch
          %331 = sbr.rel (%p329) target = $region28
        $region27: #{tpu_custom_call.1} parent=11 // pred_region
          _
        $region28: #{tpu_custom_call.1} parent=11 // pred_fallthru
          _
      $region12: #{tpu_custom_call.1} parent=5 // pred_fallthru
        _
      %p332 = scmp.lt.s32.totalorder %s19, 2
      // Predicated region
      $region29: #{tpu_custom_call.1} parent=5 // pred_check
        %p333 = pneg %p332
      $region30: #{tpu_custom_call.1} parent=5 // pred_check_branch
        %335 = sbr.rel (%p333) target = $region32
      $region31: #{tpu_custom_call.1} parent=5 // pred_region
        // Predicated region
        $region33: #{tpu_custom_call.1} parent=31 // pred_check
          %p336 = pneg %p53
        $region34: #{tpu_custom_call.1} parent=31 // pred_check_branch
          %338 = sbr.rel (%p336) target = $region36
        $region35: #{tpu_custom_call.1} parent=31 // pred_region
          %s339 = smul.u32 4, %s27
          %p340 = scmp.lt.s32.totalorder %s26, 1
          %s341 = scalar_select %p340, %s26, 1
          %p342 = scmp.lt.s32.totalorder %s339, 3
          %s343 = scalar_select %p342, %s339, 3
          %s344 = smul.addr %s341, 4
          %s345 = sadd.s32 %s343, %s344
          %s346 = smul.addr %s345, 8
          %s347 = scalar_lea.vmem %s0, %s346
          %s348 = smul.u32 4, %s27
        $region36: #{tpu_custom_call.1} parent=31 // pred_fallthru
          _
        // Predicated region
        $region37: #{tpu_custom_call.1} parent=31 // pred_check
          %p349 = pneg %p81
        $region38: #{tpu_custom_call.1} parent=31 // pred_check_branch
          %351 = sbr.rel (%p349) target = $region40
        $region39: #{tpu_custom_call.1} parent=31 // pred_region
          %s352 = smul.u32 4, %s27
          %p353 = scmp.lt.s32.totalorder %s26, 1
          %s354 = scalar_select %p353, %s26, 1
          %p355 = scmp.lt.s32.totalorder %s352, 3
          %s356 = scalar_select %p355, %s352, 3
          %s357 = smul.addr %s354, 4
          %s358 = sadd.s32 %s356, %s357
          %s359 = scalar_lea.vmem %s1, %s358
          %s360 = smul.u32 4, %s27
        $region40: #{tpu_custom_call.1} parent=31 // pred_fallthru
          _
        // Predicated region
        $region41: #{tpu_custom_call.1} parent=31 // pred_check
          %p361 = pneg %p107
        $region42: #{tpu_custom_call.1} parent=31 // pred_check_branch
          %363 = sbr.rel (%p361) target = $region44
        $region43: #{tpu_custom_call.1} parent=31 // pred_region
          %p364 = scmp.lt.s32.totalorder %s26, 1
          %s365 = scalar_select %p364, %s26, 1
          %s366 = smul.addr %s365, 16
          %s367 = smul.addr %s366, 8
          %s368 = scalar_lea.vmem %s2, %s367
        $region44: #{tpu_custom_call.1} parent=31 // pred_fallthru
          _
        // Predicated region
        $region45: #{tpu_custom_call.1} parent=31 // pred_check
          %p369 = pneg %p133
        $region46: #{tpu_custom_call.1} parent=31 // pred_check_branch
          %371 = sbr.rel (%p369) target = $region48
        $region47: #{tpu_custom_call.1} parent=31 // pred_region
          %p372 = scmp.lt.s32.totalorder %s26, 1
          %s373 = scalar_select %p372, %s26, 1
          %s374 = smul.addr %s373, 16
          %s375 = smul.addr %s374, 8
          %s376 = scalar_lea.vmem %s3, %s375
        $region48: #{tpu_custom_call.1} parent=31 // pred_fallthru
          _
        // Predicated region
        $region49: #{tpu_custom_call.1} parent=31 // pred_check
          %p377 = pneg %p159
        $region50: #{tpu_custom_call.1} parent=31 // pred_check_branch
          %379 = sbr.rel (%p377) target = $region52
        $region51: #{tpu_custom_call.1} parent=31 // pred_region
          %p380 = scmp.lt.s32.totalorder %s26, 1
          %s381 = scalar_select %p380, %s26, 1
          %s382 = smul.addr %s381, 4
          %s383 = smul.addr %s382, 8
          %s384 = scalar_lea.vmem %s4, %s383
        $region52: #{tpu_custom_call.1} parent=31 // pred_fallthru
          _
        // Predicated region
        $region53: #{tpu_custom_call.1} parent=31 // pred_check
          %p385 = pneg %p187
        $region54: #{tpu_custom_call.1} parent=31 // pred_check_branch
          %387 = sbr.rel (%p385) target = $region56
        $region55: #{tpu_custom_call.1} parent=31 // pred_region
          %s388 = smul.u32 4, %s27
          %p389 = scmp.lt.s32.totalorder %s26, 1
          %s390 = scalar_select %p389, %s26, 1
          %p391 = scmp.lt.s32.totalorder %s388, 3
          %s392 = scalar_select %p391, %s388, 3
          %s393 = smul.addr %s390, 8
          %s394 = sadd.s32 %s392, %s393
          %s395 = smul.addr %s394, 8
          %s396 = scalar_lea.vmem %s5, %s395
          %s397 = smul.u32 4, %s27
        $region56: #{tpu_custom_call.1} parent=31 // pred_fallthru
          _
      $region32: #{tpu_custom_call.1} parent=5 // pred_fallthru
        _
      %p398 = scmp.le.s32.totalorder 1, %s19
      %p399 = scmp.lt.s32.totalorder %s19, 3
      %p400 = pnand %p398, %p399
      %p401 = pneg %p400
      // Predicated region
      $region57: #{tpu_custom_call.1} parent=5 // pred_check
        _
      $region58: #{tpu_custom_call.1} parent=5 // pred_check_branch
        %403 = sbr.rel (%p400) target = $region60
      $region59: #{tpu_custom_call.1} parent=5 // pred_region
        %s404 = ssub.s32 %s19, 1
        %s405 = smul.u32 4, %s29
        %p406 = scmp.lt.s32.totalorder %s28, 1
        %s407 = scalar_select %p406, %s28, 1
        %p408 = scmp.lt.s32.totalorder %s405, 3
        %s409 = scalar_select %p408, %s405, 3
        %s410 = smul.addr %s407, 4
        %s411 = sadd.s32 %s409, %s410
        %s412 = smul.addr %s411, 8
        %s413 = scalar_lea.vmem %s0, %s412
        %p414 = pneg %p59
        %p415 = pneg %p56
        %s416 = smul.u32 4, %s29
        %p417 = scmp.lt.s32.totalorder %s28, 1
        %s418 = scalar_select %p417, %s28, 1
        %p419 = scmp.lt.s32.totalorder %s416, 3
        %s420 = scalar_select %p419, %s416, 3
        %s421 = smul.addr %s418, 4
        %s422 = sadd.s32 %s420, %s421
        %s423 = scalar_lea.vmem %s1, %s422
        %p424 = pneg %p87
        %p425 = pneg %p84
        %p426 = scmp.lt.s32.totalorder %s28, 1
        %s427 = scalar_select %p426, %s28, 1
        %s428 = smul.addr %s427, 16
        %s429 = smul.addr %s428, 8
        %s430 = scalar_lea.vmem %s2, %s429
        %p431 = pneg %p113
        %p432 = pneg %p110
        %p433 = scmp.lt.s32.totalorder %s28, 1
        %s434 = scalar_select %p433, %s28, 1
        %s435 = smul.addr %s434, 16
        %s436 = smul.addr %s435, 8
        %s437 = scalar_lea.vmem %s3, %s436
        %p438 = pneg %p139
        %p439 = pneg %p136
        %p440 = scmp.lt.s32.totalorder %s28, 1
        %s441 = scalar_select %p440, %s28, 1
        %s442 = smul.addr %s441, 4
        %s443 = smul.addr %s442, 8
        %s444 = scalar_lea.vmem %s4, %s443
        %p445 = pneg %p165
        %p446 = pneg %p162
        %s447 = smul.u32 4, %s29
        %p448 = scmp.lt.s32.totalorder %s28, 1
        %s449 = scalar_select %p448, %s28, 1
        %p450 = scmp.lt.s32.totalorder %s447, 3
        %s451 = scalar_select %p450, %s447, 3
        %s452 = smul.addr %s449, 8
        %s453 = sadd.s32 %s451, %s452
        %s454 = smul.addr %s453, 8
        %s455 = scalar_lea.vmem %s5, %s454
        %p456 = pneg %p193
        %p457 = pneg %p190
        %p458 = pneg %p214
        %p459 = pneg %p211
        %p460 = pneg %p235
        %p461 = pneg %p232
        %p462 = pneg %p256
        %p463 = pneg %p253
        %p464 = pneg %p277
        %p465 = pneg %p274
        %p466 = pneg %p305
        %p467 = pneg %p302
        %s468 = sand.u32 %s292, 1
        %s469 = scalar_lea.sflag [#allocation4], %s468
        %s470 = sand.u32 %s292, 1
        %s471 = smul.addr %s470, 128
        %s472 = scalar_lea.vmem [#allocation3], %s471
        %s473 = smul.u32 4, %s29
        %p474 = scmp.lt.s32.totalorder %s28, 1
        %s475 = scalar_select %p474, %s28, 1
        %p476 = scmp.lt.s32.totalorder %s473, 3
        %s477 = scalar_select %p476, %s473, 3
        %s478 = smul.addr %s475, 4
        %s479 = sadd.s32 %s477, %s478
        %s480 = smul.addr %s479, 8
        %s481 = scalar_lea.vmem %s0, %s480
        %s482 = smul.u32 4, %s29
        %s483 = smul.u32 4, %s29
        %p484 = scmp.lt.s32.totalorder %s28, 1
        %s485 = scalar_select %p484, %s28, 1
        %p486 = scmp.lt.s32.totalorder %s483, 3
        %s487 = scalar_select %p486, %s483, 3
        %s488 = smul.addr %s485, 4
        %s489 = sadd.s32 %s487, %s488
        %s490 = scalar_lea.vmem %s1, %s489
        %s491 = smul.u32 4, %s29
        %p492 = scmp.lt.s32.totalorder %s28, 1
        %s493 = scalar_select %p492, %s28, 1
        %s494 = smul.addr %s493, 16
        %s495 = smul.addr %s494, 8
        %s496 = scalar_lea.vmem %s2, %s495
        %p497 = scmp.lt.s32.totalorder %s28, 1
        %s498 = scalar_select %p497, %s28, 1
        %s499 = smul.addr %s498, 16
        %s500 = smul.addr %s499, 8
        %s501 = scalar_lea.vmem %s3, %s500
        %p502 = scmp.lt.s32.totalorder %s28, 1
        %s503 = scalar_select %p502, %s28, 1
        %s504 = smul.addr %s503, 4
        %s505 = smul.addr %s504, 8
        %s506 = scalar_lea.vmem %s4, %s505
        %s507 = smul.u32 4, %s29
        %p508 = scmp.lt.s32.totalorder %s28, 1
        %s509 = scalar_select %p508, %s28, 1
        %p510 = scmp.lt.s32.totalorder %s507, 3
        %s511 = scalar_select %p510, %s507, 3
        %s512 = smul.addr %s509, 8
        %s513 = sadd.s32 %s511, %s512
        %s514 = smul.addr %s513, 8
        %s515 = scalar_lea.vmem %s5, %s514
        %s516 = smul.u32 4, %s29
        %s517 = smul.u32 4, %s29
        loop: start=0, step=1, limit=4
        $region61: #{tpu_custom_call.1} parent=59 // loop_pre_header
          _
        $region62: #{tpu_custom_call.1} parent=59 // loop_header
          %s519 = sphi 0, %s523
          %p520 = scmp.ge.s32.totalorder %s519, 4
        $region63: #{tpu_custom_call.1} parent=59 // loop_header_branch
          %522 = sbr.rel (%p520) target = $region67
        $region64: #{tpu_custom_call.1} parent=59 // loop_body
          %s524 = smul.u32 %s519, 128
          %v525 = vld [vmem:[%s496] sm:$0xff]
          %v526 = vld [vmem:[%s496 + $0x8] sm:$0xff]
          %v527 = vld [vmem:[%s496 + $0x10] sm:$0xff]
          %v528 = vld [vmem:[%s496 + $0x18] sm:$0xff]
          %v529 = vld [vmem:[%s496 + $0x20] sm:$0xff]
          %v530 = vld [vmem:[%s496 + $0x28] sm:$0xff]
          %v531 = vld [vmem:[%s496 + $0x30] sm:$0xff]
          %v532 = vld [vmem:[%s496 + $0x38] sm:$0xff]
          %v533 = vld [vmem:[%s496 + $0x40] sm:$0xff]
          %v534 = vld [vmem:[%s496 + $0x48] sm:$0xff]
          %v535 = vld [vmem:[%s496 + $0x50] sm:$0xff]
          %v536 = vld [vmem:[%s496 + $0x58] sm:$0xff]
          %v537 = vld [vmem:[%s496 + $0x60] sm:$0xff]
          %v538 = vld [vmem:[%s496 + $0x68] sm:$0xff]
          %v539 = vld [vmem:[%s496 + $0x70] sm:$0xff]
          %v540 = vld [vmem:[%s496 + $0x78] sm:$0xff]
          %v541 = vld [vmem:[%s501] sm:$0xff]
          %v542 = vld [vmem:[%s501 + $0x8] sm:$0xff]
          %v543 = vld [vmem:[%s501 + $0x10] sm:$0xff]
          %v544 = vld [vmem:[%s501 + $0x18] sm:$0xff]
          %v545 = vld [vmem:[%s501 + $0x20] sm:$0xff]
          %v546 = vld [vmem:[%s501 + $0x28] sm:$0xff]
          %v547 = vld [vmem:[%s501 + $0x30] sm:$0xff]
          %v548 = vld [vmem:[%s501 + $0x38] sm:$0xff]
          %v549 = vld [vmem:[%s501 + $0x40] sm:$0xff]
          %v550 = vld [vmem:[%s501 + $0x48] sm:$0xff]
          %v551 = vld [vmem:[%s501 + $0x50] sm:$0xff]
          %v552 = vld [vmem:[%s501 + $0x58] sm:$0xff]
          %v553 = vld [vmem:[%s501 + $0x60] sm:$0xff]
          %v554 = vld [vmem:[%s501 + $0x68] sm:$0xff]
          %v555 = vld [vmem:[%s501 + $0x70] sm:$0xff]
          %v556 = vld [vmem:[%s501 + $0x78] sm:$0xff]
          %v557 = vld [vmem:[%s506] sm:$0xff]
          %v558 = vld [vmem:[%s506 + $0x8] sm:$0xff]
          %v559 = vld [vmem:[%s506 + $0x10] sm:$0xff]
          %v560 = vld [vmem:[%s506 + $0x18] sm:$0xff]
          %s561 = sshra.s32 %s524, 7
          %s562 = sand.u32 %s524, 127
          %s563 = smul.addr %s561, 8
          %s564 = scalar_lea.vmem %s481, %s563
          %v565 = vld [vmem:[%s564] sm:$0x1f]
          %s566 = scalar_lea.vmem %s490, %s561
          %v567 = vld [vmem:[%s566] sm:$0x1]
          %vm568 = vcmask 39936
          %v570 = vsel %vm568, %v525, 0
          %v573 = vsel %vm568, %v526, 0
          %v576 = vsel %vm568, %v527, 0
          %v579 = vsel %vm568, %v528, 0
          %v582 = vsel %vm568, %v529, 0
          %v585 = vsel %vm568, %v530, 0
          %v588 = vsel %vm568, %v531, 0
          %v591 = vsel %vm568, %v532, 0
          %v594 = vsel %vm568, %v533, 0
          %v597 = vsel %vm568, %v534, 0
          %v600 = vsel %vm568, %v535, 0
          %v603 = vsel %vm568, %v536, 0
          %v606 = vsel %vm568, %v537, 0
          %v609 = vsel %vm568, %v538, 0
          %v612 = vsel %vm568, %v539, 0
          %v615 = vsel %vm568, %v540, 0
          %vm617 = vcmask 1044480
          %v619 = vsel %vm617, %v565, 0
          %621 = vmatprep.subr.mxu0 0.0
          %622 = vmatpush1.msra.mxu0 %v619
          %623 = vmatprep.subr.mxu0 0.0
          %624 = vmatpush1.msra.mxu0 0.0
          %625 = vmatprep.subr.mxu0 0.0
          %626 = vmatpush1.msra.mxu0 0.0
          %627 = vmatprep.subr.mxu0 0.0
          %628 = vmatpush1.msra.mxu0 0.0
          %629 = vmatprep.subr.mxu0 0.0
          %630 = vmatpush1.msra.mxu0 0.0
          %631 = vmatprep.subr.mxu0 0.0
          %632 = vmatpush1.msra.mxu0 0.0
          %633 = vmatprep.subr.mxu0 0.0
          %634 = vmatpush1.msra.mxu0 0.0
          %635 = vmatprep.subr.mxu0 0.0
          %636 = vmatpush1.msra.mxu0 0.0
          %637 = vmatprep.subr.mxu0 0.0
          %638 = vmatpush1.msra.mxu0 0.0
          %639 = vmatprep.subr.mxu0 0.0
          %640 = vmatpush1.msra.mxu0 0.0
          %641 = vmatprep.subr.mxu0 0.0
          %642 = vmatpush1.msra.mxu0 0.0
          %643 = vmatprep.subr.mxu0 0.0
          %644 = vmatpush1.msra.mxu0 0.0
          %645 = vmatprep.subr.mxu0 0.0
          %646 = vmatpush1.msra.mxu0 0.0
          %647 = vmatprep.subr.mxu0 0.0
          %648 = vmatpush1.msra.mxu0 0.0
          %649 = vmatprep.subr.mxu0 0.0
          %650 = vmatpush1.msra.mxu0 0.0
          %651 = vmatprep.subr.mxu0 0.0
          %652 = vmatpush1.msra.mxu0 0.0
          %653 = vmatprep.subr.mxu0 0.0
          %654 = vmatpush1.msra.mxu0 0.0
          %655 = vmatprep.subr.mxu0 0.0
          %656 = vmatpush1.msra.mxu0 0.0
          %657 = vmatprep.subr.mxu0 0.0
          %658 = vmatpush1.msra.mxu0 0.0
          %659 = vmatprep.subr.mxu0 0.0
          %660 = vmatpush1.msra.mxu0 0.0
          %661 = vmatprep.subr.mxu0 0.0
          %662 = vmatpush1.msra.mxu0 0.0
          %663 = vmatprep.subr.mxu0 0.0
          %664 = vmatpush1.msra.mxu0 0.0
          %665 = vmatprep.subr.mxu0 0.0
          %666 = vmatpush1.msra.mxu0 0.0
          %667 = vmatprep.subr.mxu0 0.0
          %668 = vmatpush1.msra.mxu0 0.0
          %669 = vmatprep.subr.mxu0 0.0
          %670 = vmatpush1.msra.mxu0 0.0
          %671 = vmatprep.subr.mxu0 0.0
          %672 = vmatpush1.msra.mxu0 0.0
          %673 = vmatprep.subr.mxu0 0.0
          %674 = vmatpush1.msra.mxu0 0.0
          %675 = vmatprep.subr.mxu0 0.0
          %676 = vmatpush1.msra.mxu0 0.0
          %677 = vmatprep.subr.mxu0 0.0
          %678 = vmatpush1.msra.mxu0 0.0
          %679 = vmatprep.subr.mxu0 0.0
          %680 = vmatpush1.msra.mxu0 0.0
          %681 = vmatprep.subr.mxu0 0.0
          %682 = vmatpush1.msra.mxu0 0.0
          %683 = vmatprep.subr.mxu0 0.0
          %684 = vmatpush1.msra.mxu0 0.0
          %685 = vmatprep.mubr.f32.mxu0 0.0
          %686 = vmatmul.mubr.f32.gmra.mrb[0].mxu0 %v570
          %v687 = vpop.f32.mrb[0].mxu0
          %v688 = vadd.f32 0.0, %v687
          %v689 = vpop.f32.mrb[0].mxu0
          %690 = vmatprep.mubr.f32.mxu0 0.0
          %691 = vmatmul.mubr.f32.gmra.mrb[0].mxu0 %v573
          %v692 = vpop.f32.mrb[0].mxu0
          %v693 = vadd.f32 0.0, %v692
          %v694 = vpop.f32.mrb[0].mxu0
          %695 = vmatprep.mubr.f32.mxu0 0.0
          %696 = vmatmul.mubr.f32.gmra.mrb[0].mxu0 %v576
          %v697 = vpop.f32.mrb[0].mxu0
          %v698 = vadd.f32 0.0, %v697
          %v699 = vpop.f32.mrb[0].mxu0
          %700 = vmatprep.mubr.f32.mxu0 0.0
          %701 = vmatmul.mubr.f32.gmra.mrb[0].mxu0 %v579
          %v702 = vpop.f32.mrb[0].mxu0
          %v703 = vadd.f32 0.0, %v702
          %v704 = vpop.f32.mrb[0].mxu0
          %705 = vmatprep.mubr.f32.mxu0 0.0
          %706 = vmatmul.mubr.f32.gmra.mrb[0].mxu0 %v582
          %v707 = vpop.f32.mrb[0].mxu0
          %v708 = vadd.f32 0.0, %v707
          %v709 = vpop.f32.mrb[0].mxu0
          %710 = vmatprep.mubr.f32.mxu0 0.0
          %711 = vmatmul.mubr.f32.gmra.mrb[0].mxu0 %v585
          %v712 = vpop.f32.mrb[0].mxu0
          %v713 = vadd.f32 0.0, %v712
          %v714 = vpop.f32.mrb[0].mxu0
          %715 = vmatprep.mubr.f32.mxu0 0.0
          %716 = vmatmul.mubr.f32.gmra.mrb[0].mxu0 %v588
          %v717 = vpop.f32.mrb[0].mxu0
          %v718 = vadd.f32 0.0, %v717
          %v719 = vpop.f32.mrb[0].mxu0
          %720 = vmatprep.mubr.f32.mxu0 0.0
          %721 = vmatmul.mubr.f32.gmra.mrb[0].mxu0 %v591
          %v722 = vpop.f32.mrb[0].mxu0
          %v723 = vadd.f32 0.0, %v722
          %v724 = vpop.f32.mrb[0].mxu0
          %725 = vmatprep.mubr.f32.mxu0 0.0
          %726 = vmatmul.mubr.f32.gmra.mrb[0].mxu0 %v594
          %v727 = vpop.f32.mrb[0].mxu0
          %v728 = vadd.f32 0.0, %v727
          %v729 = vpop.f32.mrb[0].mxu0
          %730 = vmatprep.mubr.f32.mxu0 0.0
          %731 = vmatmul.mubr.f32.gmra.mrb[0].mxu0 %v597
          %v732 = vpop.f32.mrb[0].mxu0
          %v733 = vadd.f32 0.0, %v732
          %v734 = vpop.f32.mrb[0].mxu0
          %735 = vmatprep.mubr.f32.mxu0 0.0
          %736 = vmatmul.mubr.f32.gmra.mrb[0].mxu0 %v600
          %v737 = vpop.f32.mrb[0].mxu0
          %v738 = vadd.f32 0.0, %v737
          %v739 = vpop.f32.mrb[0].mxu0
          %740 = vmatprep.mubr.f32.mxu0 0.0
          %741 = vmatmul.mubr.f32.gmra.mrb[0].mxu0 %v603
          %v742 = vpop.f32.mrb[0].mxu0
          %v743 = vadd.f32 0.0, %v742
          %v744 = vpop.f32.mrb[0].mxu0
          %745 = vmatprep.mubr.f32.mxu0 0.0
          %746 = vmatmul.mubr.f32.gmra.mrb[0].mxu0 %v606
          %v747 = vpop.f32.mrb[0].mxu0
          %v748 = vadd.f32 0.0, %v747
          %v749 = vpop.f32.mrb[0].mxu0
          %750 = vmatprep.mubr.f32.mxu0 0.0
          %751 = vmatmul.mubr.f32.gmra.mrb[0].mxu0 %v609
          %v752 = vpop.f32.mrb[0].mxu0
          %v753 = vadd.f32 0.0, %v752
          %v754 = vpop.f32.mrb[0].mxu0
          %755 = vmatprep.mubr.f32.mxu0 0.0
          %756 = vmatmul.mubr.f32.gmra.mrb[0].mxu0 %v612
          %v757 = vpop.f32.mrb[0].mxu0
          %v758 = vadd.f32 0.0, %v757
          %v759 = vpop.f32.mrb[0].mxu0
          %760 = vmatprep.mubr.f32.mxu0 0.0
          %761 = vmatmul.mubr.f32.gmra.mrb[0].mxu0 %v615
          %v762 = vpop.f32.mrb[0].mxu0
          %v763 = vadd.f32 0.0, %v762
          %v764 = vpop.f32.mrb[0].mxu0
          %765 = vdwg.mxu0
          %766 = vset.pattern.permute.xlu0 0
          %767 = vperm.xlu0 %766, %v541
          %v768 = vpop.permute.xlu0 %767
          %769 = vset.pattern.permute.xlu0 0
          %770 = vperm.xlu0 %769, %v542
          %v771 = vpop.permute.xlu0 %770
          %772 = vset.pattern.permute.xlu0 0
          %773 = vperm.xlu0 %772, %v543
          %v774 = vpop.permute.xlu0 %773
          %775 = vset.pattern.permute.xlu0 0
          %776 = vperm.xlu0 %775, %v544
          %v777 = vpop.permute.xlu0 %776
          %778 = vset.pattern.permute.xlu0 0
          %779 = vperm.xlu0 %778, %v545
          %v780 = vpop.permute.xlu0 %779
          %781 = vset.pattern.permute.xlu0 0
          %782 = vperm.xlu0 %781, %v546
          %v783 = vpop.permute.xlu0 %782
          %784 = vset.pattern.permute.xlu0 0
          %785 = vperm.xlu0 %784, %v547
          %v786 = vpop.permute.xlu0 %785
          %787 = vset.pattern.permute.xlu0 0
          %788 = vperm.xlu0 %787, %v548
          %v789 = vpop.permute.xlu0 %788
          %790 = vset.pattern.permute.xlu0 0
          %791 = vperm.xlu0 %790, %v549
          %v792 = vpop.permute.xlu0 %791
          %793 = vset.pattern.permute.xlu0 0
          %794 = vperm.xlu0 %793, %v550
          %v795 = vpop.permute.xlu0 %794
          %796 = vset.pattern.permute.xlu0 0
          %797 = vperm.xlu0 %796, %v551
          %v798 = vpop.permute.xlu0 %797
          %799 = vset.pattern.permute.xlu0 0
          %800 = vperm.xlu0 %799, %v552
          %v801 = vpop.permute.xlu0 %800
          %802 = vset.pattern.permute.xlu0 0
          %803 = vperm.xlu0 %802, %v553
          %v804 = vpop.permute.xlu0 %803
          %805 = vset.pattern.permute.xlu0 0
          %806 = vperm.xlu0 %805, %v554
          %v807 = vpop.permute.xlu0 %806
          %808 = vset.pattern.permute.xlu0 0
          %809 = vperm.xlu0 %808, %v555
          %v810 = vpop.permute.xlu0 %809
          %811 = vset.pattern.permute.xlu0 0
          %812 = vperm.xlu0 %811, %v556
          %v813 = vpop.permute.xlu0 %812
          %v814 = vlaneseq
          %v815 = vshrl.u32 %v814, 7
          %v816 = vsub.s32 0, %v815
          %v817 = vrot.slane %v567, %v816
          %vm818 = vcmp.ne.s32.totalorder %v768, %v817
          %vm819 = vcmp.ne.s32.totalorder %v771, %v817
          %vm820 = vcmp.ne.s32.totalorder %v774, %v817
          %vm821 = vcmp.ne.s32.totalorder %v777, %v817
          %vm822 = vcmp.ne.s32.totalorder %v780, %v817
          %vm823 = vcmp.ne.s32.totalorder %v783, %v817
          %vm824 = vcmp.ne.s32.totalorder %v786, %v817
          %vm825 = vcmp.ne.s32.totalorder %v789, %v817
          %vm826 = vcmp.ne.s32.totalorder %v792, %v817
          %vm827 = vcmp.ne.s32.totalorder %v795, %v817
          %vm828 = vcmp.ne.s32.totalorder %v798, %v817
          %vm829 = vcmp.ne.s32.totalorder %v801, %v817
          %vm830 = vcmp.ne.s32.totalorder %v804, %v817
          %vm831 = vcmp.ne.s32.totalorder %v807, %v817
          %vm832 = vcmp.ne.s32.totalorder %v810, %v817
          %vm833 = vcmp.ne.s32.totalorder %v813, %v817
          %v834 = vsel %vm818, 1e+08, %v688
          %v835 = vsel %vm819, 1e+08, %v693
          %v836 = vsel %vm820, 1e+08, %v698
          %v837 = vsel %vm821, 1e+08, %v703
          %v838 = vsel %vm822, 1e+08, %v708
          %v839 = vsel %vm823, 1e+08, %v713
          %v840 = vsel %vm824, 1e+08, %v718
          %v841 = vsel %vm825, 1e+08, %v723
          %v842 = vsel %vm826, 1e+08, %v728
          %v843 = vsel %vm827, 1e+08, %v733
          %v844 = vsel %vm828, 1e+08, %v738
          %v845 = vsel %vm829, 1e+08, %v743
          %v846 = vsel %vm830, 1e+08, %v748
          %v847 = vsel %vm831, 1e+08, %v753
          %v848 = vsel %vm832, 1e+08, %v758
          %v849 = vsel %vm833, 1e+08, %v763
          %v850 = vmin.f32 %v834, %v838
          %v851 = vmin.f32 %v835, %v839
          %v852 = vmin.f32 %v836, %v840
          %v853 = vmin.f32 %v837, %v841
          %v854 = vmin.f32 %v850, %v842
          %v855 = vmin.f32 %v851, %v843
          %v856 = vmin.f32 %v852, %v844
          %v857 = vmin.f32 %v853, %v845
          %v858 = vmin.f32 %v854, %v846
          %v859 = vmin.f32 %v855, %v847
          %v860 = vmin.f32 %v856, %v848
          %v861 = vmin.f32 %v857, %v849
          %v862 = vmin.f32 %v858, %v859
          %v863 = vmin.f32 %v860, %v861
          %v864 = vmin.f32 %v862, %v863
          %v865 = vrot.slane %v864, 4
          %v866 = vmin.f32 %v864, %v865
          %v867 = vrot.slane %v866, 2
          %v868 = vmin.f32 %v866, %v867
          %v869 = vrot.slane %v868, 1
          %v870 = vmin.f32 %v868, %v869
          %vm871 = vcmp.eq.f32.partialorder %v834, %v870
          %vm872 = vcmp.eq.f32.partialorder %v835, %v870
          %vm873 = vcmp.eq.f32.partialorder %v836, %v870
          %vm874 = vcmp.eq.f32.partialorder %v837, %v870
          %vm875 = vcmp.eq.f32.partialorder %v838, %v870
          %vm876 = vcmp.eq.f32.partialorder %v839, %v870
          %vm877 = vcmp.eq.f32.partialorder %v840, %v870
          %vm878 = vcmp.eq.f32.partialorder %v841, %v870
          %vm879 = vcmp.eq.f32.partialorder %v842, %v870
          %vm880 = vcmp.eq.f32.partialorder %v843, %v870
          %vm881 = vcmp.eq.f32.partialorder %v844, %v870
          %vm882 = vcmp.eq.f32.partialorder %v845, %v870
          %vm883 = vcmp.eq.f32.partialorder %v846, %v870
          %vm884 = vcmp.eq.f32.partialorder %v847, %v870
          %vm885 = vcmp.eq.f32.partialorder %v848, %v870
          %vm886 = vcmp.eq.f32.partialorder %v849, %v870
          %v887 = vadd.f32 %v870, 1e-08
          %v888 = vrcp.pop %v887
          %v889 = vsel %vm871, %v888, 0.0
          %v890 = vsel %vm872, %v888, 0.0
          %v891 = vsel %vm873, %v888, 0.0
          %v892 = vsel %vm874, %v888, 0.0
          %v893 = vsel %vm875, %v888, 0.0
          %v894 = vsel %vm876, %v888, 0.0
          %v895 = vsel %vm877, %v888, 0.0
          %v896 = vsel %vm878, %v888, 0.0
          %v897 = vsel %vm879, %v888, 0.0
          %v898 = vsel %vm880, %v888, 0.0
          %v899 = vsel %vm881, %v888, 0.0
          %v900 = vsel %vm882, %v888, 0.0
          %v901 = vsel %vm883, %v888, 0.0
          %v902 = vsel %vm884, %v888, 0.0
          %v903 = vsel %vm885, %v888, 0.0
          %v904 = vsel %vm886, %v888, 0.0
          %v905 = vadd.f32 %v889, 0.0
          %v906 = vadd.f32 %v890, 0.0
          %v907 = vadd.f32 %v891, 0.0
          %v908 = vadd.f32 %v892, 0.0
          %v909 = vadd.f32 %v893, 0.0
          %v910 = vadd.f32 %v894, 0.0
          %v911 = vadd.f32 %v895, 0.0
          %v912 = vadd.f32 %v896, 0.0
          %v913 = vadd.f32 %v897, 0.0
          %v914 = vadd.f32 %v898, 0.0
          %v915 = vadd.f32 %v899, 0.0
          %v916 = vadd.f32 %v900, 0.0
          %v917 = vadd.f32 %v901, 0.0
          %v918 = vadd.f32 %v902, 0.0
          %v919 = vadd.f32 %v903, 0.0
          %v920 = vadd.f32 %v904, 0.0
          %v921 = vadd.f32 %v888, 0.0
          %v922 = vsel %vm871, 3e+38, %v834
          %v923 = vsel %vm872, 3e+38, %v835
          %v924 = vsel %vm873, 3e+38, %v836
          %v925 = vsel %vm874, 3e+38, %v837
          %v926 = vsel %vm875, 3e+38, %v838
          %v927 = vsel %vm876, 3e+38, %v839
          %v928 = vsel %vm877, 3e+38, %v840
          %v929 = vsel %vm878, 3e+38, %v841
          %v930 = vsel %vm879, 3e+38, %v842
          %v931 = vsel %vm880, 3e+38, %v843
          %v932 = vsel %vm881, 3e+38, %v844
          %v933 = vsel %vm882, 3e+38, %v845
          %v934 = vsel %vm883, 3e+38, %v846
          %v935 = vsel %vm884, 3e+38, %v847
          %v936 = vsel %vm885, 3e+38, %v848
          %v937 = vsel %vm886, 3e+38, %v849
          %v938 = vmin.f32 %v922, %v926
          %v939 = vmin.f32 %v923, %v927
          %v940 = vmin.f32 %v924, %v928
          %v941 = vmin.f32 %v925, %v929
          %v942 = vmin.f32 %v938, %v930
          %v943 = vmin.f32 %v939, %v931
          %v944 = vmin.f32 %v940, %v932
          %v945 = vmin.f32 %v941, %v933
          %v946 = vmin.f32 %v942, %v934
          %v947 = vmin.f32 %v943, %v935
          %v948 = vmin.f32 %v944, %v936
          %v949 = vmin.f32 %v945, %v937
          %v950 = vmin.f32 %v946, %v947
          %v951 = vmin.f32 %v948, %v949
          %v952 = vmin.f32 %v950, %v951
          %v953 = vrot.slane %v952, 4
          %v954 = vmin.f32 %v952, %v953
          %v955 = vrot.slane %v954, 2
          %v956 = vmin.f32 %v954, %v955
          %v957 = vrot.slane %v956, 1
          %v958 = vmin.f32 %v956, %v957
          %vm959 = vcmp.eq.f32.partialorder %v922, %v958
          %vm960 = vcmp.eq.f32.partialorder %v923, %v958
          %vm961 = vcmp.eq.f32.partialorder %v924, %v958
          %vm962 = vcmp.eq.f32.partialorder %v925, %v958
          %vm963 = vcmp.eq.f32.partialorder %v926, %v958
          %vm964 = vcmp.eq.f32.partialorder %v927, %v958
          %vm965 = vcmp.eq.f32.partialorder %v928, %v958
          %vm966 = vcmp.eq.f32.partialorder %v929, %v958
          %vm967 = vcmp.eq.f32.partialorder %v930, %v958
          %vm968 = vcmp.eq.f32.partialorder %v931, %v958
          %vm969 = vcmp.eq.f32.partialorder %v932, %v958
          %vm970 = vcmp.eq.f32.partialorder %v933, %v958
          %vm971 = vcmp.eq.f32.partialorder %v934, %v958
          %vm972 = vcmp.eq.f32.partialorder %v935, %v958
          %vm973 = vcmp.eq.f32.partialorder %v936, %v958
          %vm974 = vcmp.eq.f32.partialorder %v937, %v958
          %v975 = vadd.f32 %v958, 1e-08
          %v976 = vrcp.pop %v975
          %v977 = vsel %vm959, %v976, 0.0
          %v978 = vsel %vm960, %v976, 0.0
          %v979 = vsel %vm961, %v976, 0.0
          %v980 = vsel %vm962, %v976, 0.0
          %v981 = vsel %vm963, %v976, 0.0
          %v982 = vsel %vm964, %v976, 0.0
          %v983 = vsel %vm965, %v976, 0.0
          %v984 = vsel %vm966, %v976, 0.0
          %v985 = vsel %vm967, %v976, 0.0
          %v986 = vsel %vm968, %v976, 0.0
          %v987 = vsel %vm969, %v976, 0.0
          %v988 = vsel %vm970, %v976, 0.0
          %v989 = vsel %vm971, %v976, 0.0
          %v990 = vsel %vm972, %v976, 0.0
          %v991 = vsel %vm973, %v976, 0.0
          %v992 = vsel %vm974, %v976, 0.0
          %v993 = vadd.f32 %v905, %v977
          %v994 = vadd.f32 %v906, %v978
          %v995 = vadd.f32 %v907, %v979
          %v996 = vadd.f32 %v908, %v980
          %v997 = vadd.f32 %v909, %v981
          %v998 = vadd.f32 %v910, %v982
          %v999 = vadd.f32 %v911, %v983
          %v1000 = vadd.f32 %v912, %v984
          %v1001 = vadd.f32 %v913, %v985
          %v1002 = vadd.f32 %v914, %v986
          %v1003 = vadd.f32 %v915, %v987
          %v1004 = vadd.f32 %v916, %v988
          %v1005 = vadd.f32 %v917, %v989
          %v1006 = vadd.f32 %v918, %v990
          %v1007 = vadd.f32 %v919, %v991
          %v1008 = vadd.f32 %v920, %v992
          %v1009 = vadd.f32 %v921, %v976
          %v1010 = vsel %vm959, 3e+38, %v922
          %v1011 = vsel %vm960, 3e+38, %v923
          %v1012 = vsel %vm961, 3e+38, %v924
          %v1013 = vsel %vm962, 3e+38, %v925
          %v1014 = vsel %vm963, 3e+38, %v926
          %v1015 = vsel %vm964, 3e+38, %v927
          %v1016 = vsel %vm965, 3e+38, %v928
          %v1017 = vsel %vm966, 3e+38, %v929
          %v1018 = vsel %vm967, 3e+38, %v930
          %v1019 = vsel %vm968, 3e+38, %v931
          %v1020 = vsel %vm969, 3e+38, %v932
          %v1021 = vsel %vm970, 3e+38, %v933
          %v1022 = vsel %vm971, 3e+38, %v934
          %v1023 = vsel %vm972, 3e+38, %v935
          %v1024 = vsel %vm973, 3e+38, %v936
          %v1025 = vsel %vm974, 3e+38, %v937
          %v1026 = vmin.f32 %v1010, %v1014
          %v1027 = vmin.f32 %v1011, %v1015
          %v1028 = vmin.f32 %v1012, %v1016
          %v1029 = vmin.f32 %v1013, %v1017
          %v1030 = vmin.f32 %v1026, %v1018
          %v1031 = vmin.f32 %v1027, %v1019
          %v1032 = vmin.f32 %v1028, %v1020
          %v1033 = vmin.f32 %v1029, %v1021
          %v1034 = vmin.f32 %v1030, %v1022
          %v1035 = vmin.f32 %v1031, %v1023
          %v1036 = vmin.f32 %v1032, %v1024
          %v1037 = vmin.f32 %v1033, %v1025
          %v1038 = vmin.f32 %v1034, %v1035
          %v1039 = vmin.f32 %v1036, %v1037
          %v1040 = vmin.f32 %v1038, %v1039
          %v1041 = vrot.slane %v1040, 4
          %v1042 = vmin.f32 %v1040, %v1041
          %v1043 = vrot.slane %v1042, 2
          %v1044 = vmin.f32 %v1042, %v1043
          %v1045 = vrot.slane %v1044, 1
          %v1046 = vmin.f32 %v1044, %v1045
          %vm1047 = vcmp.eq.f32.partialorder %v1010, %v1046
          %vm1048 = vcmp.eq.f32.partialorder %v1011, %v1046
          %vm1049 = vcmp.eq.f32.partialorder %v1012, %v1046
          %vm1050 = vcmp.eq.f32.partialorder %v1013, %v1046
          %vm1051 = vcmp.eq.f32.partialorder %v1014, %v1046
          %vm1052 = vcmp.eq.f32.partialorder %v1015, %v1046
          %vm1053 = vcmp.eq.f32.partialorder %v1016, %v1046
          %vm1054 = vcmp.eq.f32.partialorder %v1017, %v1046
          %vm1055 = vcmp.eq.f32.partialorder %v1018, %v1046
          %vm1056 = vcmp.eq.f32.partialorder %v1019, %v1046
          %vm1057 = vcmp.eq.f32.partialorder %v1020, %v1046
          %vm1058 = vcmp.eq.f32.partialorder %v1021, %v1046
          %vm1059 = vcmp.eq.f32.partialorder %v1022, %v1046
          %vm1060 = vcmp.eq.f32.partialorder %v1023, %v1046
          %vm1061 = vcmp.eq.f32.partialorder %v1024, %v1046
          %vm1062 = vcmp.eq.f32.partialorder %v1025, %v1046
          %v1063 = vadd.f32 %v1046, 1e-08
          %v1064 = vrcp.pop %v1063
          %v1065 = vsel %vm1047, %v1064, 0.0
          %v1066 = vsel %vm1048, %v1064, 0.0
          %v1067 = vsel %vm1049, %v1064, 0.0
          %v1068 = vsel %vm1050, %v1064, 0.0
          %v1069 = vsel %vm1051, %v1064, 0.0
          %v1070 = vsel %vm1052, %v1064, 0.0
          %v1071 = vsel %vm1053, %v1064, 0.0
          %v1072 = vsel %vm1054, %v1064, 0.0
          %v1073 = vsel %vm1055, %v1064, 0.0
          %v1074 = vsel %vm1056, %v1064, 0.0
          %v1075 = vsel %vm1057, %v1064, 0.0
          %v1076 = vsel %vm1058, %v1064, 0.0
          %v1077 = vsel %vm1059, %v1064, 0.0
          %v1078 = vsel %vm1060, %v1064, 0.0
          %v1079 = vsel %vm1061, %v1064, 0.0
          %v1080 = vsel %vm1062, %v1064, 0.0
          %v1081 = vadd.f32 %v993, %v1065
          %v1082 = vadd.f32 %v994, %v1066
          %v1083 = vadd.f32 %v995, %v1067
          %v1084 = vadd.f32 %v996, %v1068
          %v1085 = vadd.f32 %v997, %v1069
          %v1086 = vadd.f32 %v998, %v1070
          %v1087 = vadd.f32 %v999, %v1071
          %v1088 = vadd.f32 %v1000, %v1072
          %v1089 = vadd.f32 %v1001, %v1073
          %v1090 = vadd.f32 %v1002, %v1074
          %v1091 = vadd.f32 %v1003, %v1075
          %v1092 = vadd.f32 %v1004, %v1076
          %v1093 = vadd.f32 %v1005, %v1077
          %v1094 = vadd.f32 %v1006, %v1078
          %v1095 = vadd.f32 %v1007, %v1079
          %v1096 = vadd.f32 %v1008, %v1080
          %v1097 = vadd.f32 %v1009, %v1064
          %1098 = vmatprep.subr.mxu0 0.0
          %1099 = vmatpush1.msra.mxu0 %v1081
          %1100 = vmatprep.subr.mxu0 0.0
          %1101 = vmatpush1.msra.mxu0 %v1082
          %1102 = vmatprep.subr.mxu0 0.0
          %1103 = vmatpush1.msra.mxu0 %v1083
          %1104 = vmatprep.subr.mxu0 0.0
          %1105 = vmatpush1.msra.mxu0 %v1084
          %1106 = vmatprep.subr.mxu0 0.0
          %1107 = vmatpush1.msra.mxu0 %v1085
          %1108 = vmatprep.subr.mxu0 0.0
          %1109 = vmatpush1.msra.mxu0 %v1086
          %1110 = vmatprep.subr.mxu0 0.0
          %1111 = vmatpush1.msra.mxu0 %v1087
          %1112 = vmatprep.subr.mxu0 0.0
          %1113 = vmatpush1.msra.mxu0 %v1088
          %1114 = vmatprep.subr.mxu0 0.0
          %1115 = vmatpush1.msra.mxu0 %v1089
          %1116 = vmatprep.subr.mxu0 0.0
          %1117 = vmatpush1.msra.mxu0 %v1090
          %1118 = vmatprep.subr.mxu0 0.0
          %1119 = vmatpush1.msra.mxu0 %v1091
          %1120 = vmatprep.subr.mxu0 0.0
          %1121 = vmatpush1.msra.mxu0 %v1092
          %1122 = vmatprep.subr.mxu0 0.0
          %1123 = vmatpush1.msra.mxu0 %v1093
          %1124 = vmatprep.subr.mxu0 0.0
          %1125 = vmatpush1.msra.mxu0 %v1094
          %1126 = vmatprep.subr.mxu0 0.0
          %1127 = vmatpush1.msra.mxu0 %v1095
          %1128 = vmatprep.subr.mxu0 0.0
          %1129 = vmatpush1.msra.mxu0 %v1096
          %1130 = vmatprep.subr.mxu0 0.0
          %1131 = vmatpush1.msra.mxu0 0.0
          %1132 = vmatprep.subr.mxu0 0.0
          %1133 = vmatpush1.msra.mxu0 0.0
          %1134 = vmatprep.subr.mxu0 0.0
          %1135 = vmatpush1.msra.mxu0 0.0
          %1136 = vmatprep.subr.mxu0 0.0
          %1137 = vmatpush1.msra.mxu0 0.0
          %1138 = vmatprep.subr.mxu0 0.0
          %1139 = vmatpush1.msra.mxu0 0.0
          %1140 = vmatprep.subr.mxu0 0.0
          %1141 = vmatpush1.msra.mxu0 0.0
          %1142 = vmatprep.subr.mxu0 0.0
          %1143 = vmatpush1.msra.mxu0 0.0
          %1144 = vmatprep.subr.mxu0 0.0
          %1145 = vmatpush1.msra.mxu0 0.0
          %1146 = vmatprep.subr.mxu0 0.0
          %1147 = vmatpush1.msra.mxu0 0.0
          %1148 = vmatprep.subr.mxu0 0.0
          %1149 = vmatpush1.msra.mxu0 0.0
          %1150 = vmatprep.subr.mxu0 0.0
          %1151 = vmatpush1.msra.mxu0 0.0
          %1152 = vmatprep.subr.mxu0 0.0
          %1153 = vmatpush1.msra.mxu0 0.0
          %1154 = vmatprep.subr.mxu0 0.0
          %1155 = vmatpush1.msra.mxu0 0.0
          %1156 = vmatprep.subr.mxu0 0.0
          %1157 = vmatpush1.msra.mxu0 0.0
          %1158 = vmatprep.subr.mxu0 0.0
          %1159 = vmatpush1.msra.mxu0 0.0
          %1160 = vmatprep.subr.mxu0 0.0
          %1161 = vmatpush1.msra.mxu0 0.0
          %1162 = vmatprep.mubr.f32.mxu0 0.0
          %1163 = vmatmul.mubr.f32.gmra.mrb[0].mxu0 %v557
          %v1164 = vpop.f32.mrb[0].mxu0
          %v1165 = vadd.f32 0.0, %v1164
          %v1166 = vpop.f32.mrb[0].mxu0
          %1167 = vmatprep.mubr.f32.mxu0 0.0
          %1168 = vmatmul.mubr.f32.gmra.mrb[0].mxu0 %v558
          %v1169 = vpop.f32.mrb[0].mxu0
          %v1170 = vadd.f32 0.0, %v1169
          %v1171 = vpop.f32.mrb[0].mxu0
          %1172 = vmatprep.mubr.f32.mxu0 0.0
          %1173 = vmatmul.mubr.f32.gmra.mrb[0].mxu0 %v559
          %v1174 = vpop.f32.mrb[0].mxu0
          %v1175 = vadd.f32 0.0, %v1174
          %v1176 = vpop.f32.mrb[0].mxu0
          %1177 = vmatprep.mubr.f32.mxu0 0.0
          %1178 = vmatmul.mubr.f32.gmra.mrb[0].mxu0 %v560
          %v1179 = vpop.f32.mrb[0].mxu0
          %v1180 = vadd.f32 0.0, %v1179
          %v1181 = vpop.f32.mrb[0].mxu0
          %1182 = vdwg.mxu0
          %v1183 = vrcp.pop %v1097
          %v1184 = vmul.f32 %v1165, %v1183
          %v1185 = vmul.f32 %v1170, %v1183
          %v1186 = vmul.f32 %v1175, %v1183
          %v1187 = vmul.f32 %v1180, %v1183
          %s1188 = smul.addr %s561, 8
          %s1189 = scalar_lea.vmem [#allocation2], %s1188
          %1190 = vst [vmem:[%s1189] sm:$0xff] %v1184
          %1191 = vst [vmem:[%s1189 + $0x20] sm:$0xff] %v1185
          %1192 = vst [vmem:[%s1189 + $0x40] sm:$0xff] %v1186
          %1193 = vst [vmem:[%s1189 + $0x60] sm:$0xff] %v1187
        $region65: #{tpu_custom_call.1} parent=59 // loop_footer
          %s523 = sadd.s32 1, %s519
        $region66: #{tpu_custom_call.1} parent=59 // loop_footer_branch
          %518 = sbr.rel target = $region62
        $region67: #{tpu_custom_call.1} parent=59 // loop_exit
          _
        %v1194 = vld [vmem:[%s6] sm:$0xff]
        %v1195 = vld [vmem:[%s6 + $0x8] sm:$0xff]
        %v1196 = vld [vmem:[%s6 + $0x10] sm:$0xff]
        %v1197 = vld [vmem:[%s6 + $0x18] sm:$0xff]
        %v1198 = vld [vmem:[%s7] sm:$0xff]
        %v1199 = vld [vmem:[%s7 + $0x8] sm:$0xff]
        %v1200 = vld [vmem:[%s7 + $0x10] sm:$0xff]
        %v1201 = vld [vmem:[%s7 + $0x18] sm:$0xff]
        %v1202 = vld [vmem:[%s515] sm:$0xff]
        %v1203 = vld [vmem:[%s515 + $0x8] sm:$0xff]
        %v1204 = vld [vmem:[%s515 + $0x10] sm:$0xff]
        %v1205 = vld [vmem:[%s515 + $0x18] sm:$0xff]
        %v1206 = vld [vmem:[%s515 + $0x20] sm:$0xff]
        %v1207 = vld [vmem:[%s515 + $0x28] sm:$0xff]
        %v1208 = vld [vmem:[%s515 + $0x30] sm:$0xff]
        %v1209 = vld [vmem:[%s515 + $0x38] sm:$0xff]
        %v1210 = vld [vmem:[#allocation2] sm:$0xff]
        %v1211 = vld [vmem:[#allocation2 + $0x8] sm:$0xff]
        %v1212 = vld [vmem:[#allocation2 + $0x10] sm:$0xff]
        %v1213 = vld [vmem:[#allocation2 + $0x18] sm:$0xff]
        %v1214 = vld [vmem:[#allocation2 + $0x20] sm:$0xff]
        %v1215 = vld [vmem:[#allocation2 + $0x28] sm:$0xff]
        %v1216 = vld [vmem:[#allocation2 + $0x30] sm:$0xff]
        %v1217 = vld [vmem:[#allocation2 + $0x38] sm:$0xff]
        %v1218 = vld [vmem:[#allocation2 + $0x40] sm:$0xff]
        %v1219 = vld [vmem:[#allocation2 + $0x48] sm:$0xff]
        %v1220 = vld [vmem:[#allocation2 + $0x50] sm:$0xff]
        %v1221 = vld [vmem:[#allocation2 + $0x58] sm:$0xff]
        %v1222 = vld [vmem:[#allocation2 + $0x60] sm:$0xff]
        %v1223 = vld [vmem:[#allocation2 + $0x68] sm:$0xff]
        %v1224 = vld [vmem:[#allocation2 + $0x70] sm:$0xff]
        %v1225 = vld [vmem:[#allocation2 + $0x78] sm:$0xff]
        %vm1226 = vcmask 130048
        %v1228 = vsel %vm1226, %v1194, 0
        %v1231 = vsel %vm1226, %v1195, 0
        %v1234 = vsel %vm1226, %v1196, 0
        %v1237 = vsel %vm1226, %v1197, 0
        %1239 = vmatprep.subr.mxu0 %v1203
        %1240 = vmatpush1.msra.mxu0 %v1202
        %1241 = vmatprep.subr.mxu0 %v1207
        %1242 = vmatpush1.msra.mxu0 %v1206
        %1243 = vmatprep.subr.mxu0 0.0
        %1244 = vmatpush1.msra.mxu0 0.0
        %1245 = vmatprep.subr.mxu0 0.0
        %1246 = vmatpush1.msra.mxu0 0.0
        %1247 = vmatprep.subr.mxu0 0.0
        %1248 = vmatpush1.msra.mxu0 0.0
        %1249 = vmatprep.subr.mxu0 0.0
        %1250 = vmatpush1.msra.mxu0 0.0
        %1251 = vmatprep.subr.mxu0 0.0
        %1252 = vmatpush1.msra.mxu0 0.0
        %1253 = vmatprep.subr.mxu0 0.0
        %1254 = vmatpush1.msra.mxu0 0.0
        %1255 = vmatprep.subr.mxu0 0.0
        %1256 = vmatpush1.msra.mxu0 0.0
        %1257 = vmatprep.subr.mxu0 0.0
        %1258 = vmatpush1.msra.mxu0 0.0
        %1259 = vmatprep.subr.mxu0 0.0
        %1260 = vmatpush1.msra.mxu0 0.0
        %1261 = vmatprep.subr.mxu0 0.0
        %1262 = vmatpush1.msra.mxu0 0.0
        %1263 = vmatprep.subr.mxu0 0.0
        %1264 = vmatpush1.msra.mxu0 0.0
        %1265 = vmatprep.subr.mxu0 0.0
        %1266 = vmatpush1.msra.mxu0 0.0
        %1267 = vmatprep.subr.mxu0 0.0
        %1268 = vmatpush1.msra.mxu0 0.0
        %1269 = vmatprep.subr.mxu0 0.0
        %1270 = vmatpush1.msra.mxu0 0.0
        %1271 = vmatprep.subr.mxu0 0.0
        %1272 = vmatpush1.msra.mxu0 0.0
        %1273 = vmatprep.subr.mxu0 0.0
        %1274 = vmatpush1.msra.mxu0 0.0
        %1275 = vmatprep.subr.mxu0 0.0
        %1276 = vmatpush1.msra.mxu0 0.0
        %1277 = vmatprep.subr.mxu0 0.0
        %1278 = vmatpush1.msra.mxu0 0.0
        %1279 = vmatprep.subr.mxu0 0.0
        %1280 = vmatpush1.msra.mxu0 0.0
        %1281 = vmatprep.subr.mxu0 0.0
        %1282 = vmatpush1.msra.mxu0 0.0
        %1283 = vmatprep.subr.mxu0 0.0
        %1284 = vmatpush1.msra.mxu0 0.0
        %1285 = vmatprep.subr.mxu0 0.0
        %1286 = vmatpush1.msra.mxu0 0.0
        %1287 = vmatprep.subr.mxu0 0.0
        %1288 = vmatpush1.msra.mxu0 0.0
        %1289 = vmatprep.subr.mxu0 0.0
        %1290 = vmatpush1.msra.mxu0 0.0
        %1291 = vmatprep.subr.mxu0 0.0
        %1292 = vmatpush1.msra.mxu0 0.0
        %1293 = vmatprep.subr.mxu0 0.0
        %1294 = vmatpush1.msra.mxu0 0.0
        %1295 = vmatprep.subr.mxu0 0.0
        %1296 = vmatpush1.msra.mxu0 0.0
        %1297 = vmatprep.subr.mxu0 0.0
        %1298 = vmatpush1.msra.mxu0 0.0
        %1299 = vmatprep.subr.mxu0 0.0
        %1300 = vmatpush1.msra.mxu0 0.0
        %1301 = vmatprep.subr.mxu0 0.0
        %1302 = vmatpush1.msra.mxu0 0.0
        %1303 = vmatprep.mubr.f32.mxu0 0.0
        %1304 = vmatmul.mubr.f32.gmra.mrb[0].mxu0 %v1228
        %v1305 = vpop.f32.mrb[0].mxu0
        %v1306 = vadd.f32 %v1210, %v1305
        %v1307 = vpop.f32.mrb[0].mxu0
        %v1308 = vadd.f32 %v1211, %v1307
        %1309 = vmatprep.mubr.f32.mxu0 0.0
        %1310 = vmatmul.mubr.f32.gmra.mrb[0].mxu0 %v1231
        %v1311 = vpop.f32.mrb[0].mxu0
        %v1312 = vadd.f32 %v1214, %v1311
        %v1313 = vpop.f32.mrb[0].mxu0
        %v1314 = vadd.f32 %v1215, %v1313
        %1315 = vmatprep.mubr.f32.mxu0 0.0
        %1316 = vmatmul.mubr.f32.gmra.mrb[0].mxu0 %v1234
        %v1317 = vpop.f32.mrb[0].mxu0
        %v1318 = vadd.f32 %v1218, %v1317
        %v1319 = vpop.f32.mrb[0].mxu0
        %v1320 = vadd.f32 %v1219, %v1319
        %1321 = vmatprep.mubr.f32.mxu0 0.0
        %1322 = vmatmul.mubr.f32.gmra.mrb[0].mxu0 %v1237
        %v1323 = vpop.f32.mrb[0].mxu0
        %v1324 = vadd.f32 %v1222, %v1323
        %v1325 = vpop.f32.mrb[0].mxu0
        %v1326 = vadd.f32 %v1223, %v1325
        %1327 = vdwg.mxu0
        %1328 = vmatprep.subr.mxu0 %v1205
        %1329 = vmatpush1.msra.mxu0 %v1204
        %1330 = vmatprep.subr.mxu0 %v1209
        %1331 = vmatpush1.msra.mxu0 %v1208
        %1332 = vmatprep.subr.mxu0 0.0
        %1333 = vmatpush1.msra.mxu0 0.0
        %1334 = vmatprep.subr.mxu0 0.0
        %1335 = vmatpush1.msra.mxu0 0.0
        %1336 = vmatprep.subr.mxu0 0.0
        %1337 = vmatpush1.msra.mxu0 0.0
        %1338 = vmatprep.subr.mxu0 0.0
        %1339 = vmatpush1.msra.mxu0 0.0
        %1340 = vmatprep.subr.mxu0 0.0
        %1341 = vmatpush1.msra.mxu0 0.0
        %1342 = vmatprep.subr.mxu0 0.0
        %1343 = vmatpush1.msra.mxu0 0.0
        %1344 = vmatprep.subr.mxu0 0.0
        %1345 = vmatpush1.msra.mxu0 0.0
        %1346 = vmatprep.subr.mxu0 0.0
        %1347 = vmatpush1.msra.mxu0 0.0
        %1348 = vmatprep.subr.mxu0 0.0
        %1349 = vmatpush1.msra.mxu0 0.0
        %1350 = vmatprep.subr.mxu0 0.0
        %1351 = vmatpush1.msra.mxu0 0.0
        %1352 = vmatprep.subr.mxu0 0.0
        %1353 = vmatpush1.msra.mxu0 0.0
        %1354 = vmatprep.subr.mxu0 0.0
        %1355 = vmatpush1.msra.mxu0 0.0
        %1356 = vmatprep.subr.mxu0 0.0
        %1357 = vmatpush1.msra.mxu0 0.0
        %1358 = vmatprep.subr.mxu0 0.0
        %1359 = vmatpush1.msra.mxu0 0.0
        %1360 = vmatprep.subr.mxu0 0.0
        %1361 = vmatpush1.msra.mxu0 0.0
        %1362 = vmatprep.subr.mxu0 0.0
        %1363 = vmatpush1.msra.mxu0 0.0
        %1364 = vmatprep.subr.mxu0 0.0
        %1365 = vmatpush1.msra.mxu0 0.0
        %1366 = vmatprep.subr.mxu0 0.0
        %1367 = vmatpush1.msra.mxu0 0.0
        %1368 = vmatprep.subr.mxu0 0.0
        %1369 = vmatpush1.msra.mxu0 0.0
        %1370 = vmatprep.subr.mxu0 0.0
        %1371 = vmatpush1.msra.mxu0 0.0
        %1372 = vmatprep.subr.mxu0 0.0
        %1373 = vmatpush1.msra.mxu0 0.0
        %1374 = vmatprep.subr.mxu0 0.0
        %1375 = vmatpush1.msra.mxu0 0.0
        %1376 = vmatprep.subr.mxu0 0.0
        %1377 = vmatpush1.msra.mxu0 0.0
        %1378 = vmatprep.subr.mxu0 0.0
        %1379 = vmatpush1.msra.mxu0 0.0
        %1380 = vmatprep.subr.mxu0 0.0
        %1381 = vmatpush1.msra.mxu0 0.0
        %1382 = vmatprep.subr.mxu0 0.0
        %1383 = vmatpush1.msra.mxu0 0.0
        %1384 = vmatprep.subr.mxu0 0.0
        %1385 = vmatpush1.msra.mxu0 0.0
        %1386 = vmatprep.subr.mxu0 0.0
        %1387 = vmatpush1.msra.mxu0 0.0
        %1388 = vmatprep.subr.mxu0 0.0
        %1389 = vmatpush1.msra.mxu0 0.0
        %1390 = vmatprep.subr.mxu0 0.0
        %1391 = vmatpush1.msra.mxu0 0.0
        %1392 = vmatprep.mubr.f32.mxu0 0.0
        %1393 = vmatmul.mubr.f32.gmra.mrb[0].mxu0 %v1228
        %v1394 = vpop.f32.mrb[0].mxu0
        %v1395 = vadd.f32 %v1212, %v1394
        %v1396 = vpop.f32.mrb[0].mxu0
        %v1397 = vadd.f32 %v1213, %v1396
        %1398 = vmatprep.mubr.f32.mxu0 0.0
        %1399 = vmatmul.mubr.f32.gmra.mrb[0].mxu0 %v1231
        %v1400 = vpop.f32.mrb[0].mxu0
        %v1401 = vadd.f32 %v1216, %v1400
        %v1402 = vpop.f32.mrb[0].mxu0
        %v1403 = vadd.f32 %v1217, %v1402
        %1404 = vmatprep.mubr.f32.mxu0 0.0
        %1405 = vmatmul.mubr.f32.gmra.mrb[0].mxu0 %v1234
        %v1406 = vpop.f32.mrb[0].mxu0
        %v1407 = vadd.f32 %v1220, %v1406
        %v1408 = vpop.f32.mrb[0].mxu0
        %v1409 = vadd.f32 %v1221, %v1408
        %1410 = vmatprep.mubr.f32.mxu0 0.0
        %1411 = vmatmul.mubr.f32.gmra.mrb[0].mxu0 %v1237
        %v1412 = vpop.f32.mrb[0].mxu0
        %v1413 = vadd.f32 %v1224, %v1412
        %v1414 = vpop.f32.mrb[0].mxu0
        %v1415 = vadd.f32 %v1225, %v1414
        %1416 = vdwg.mxu0
        %1418 = vset.pattern.permute.xlu0 0
        %1419 = vperm.xlu0 %1418, %v1198
        %v1420 = vpop.permute.xlu0 %1419
        %1423 = vset.pattern.permute.xlu0 0
        %1424 = vperm.xlu0 %1423, %v1199
        %v1425 = vpop.permute.xlu0 %1424
        %1428 = vset.pattern.permute.xlu0 0
        %1429 = vperm.xlu0 %1428, %v1200
        %v1430 = vpop.permute.xlu0 %1429
        %1433 = vset.pattern.permute.xlu0 0
        %1434 = vperm.xlu0 %1433, %v1201
        %v1435 = vpop.permute.xlu0 %1434
        %v1437 = vadd.f32 %v1306, %v1420
        %v1438 = vadd.f32 %v1308, %v1420
        %v1439 = vadd.f32 %v1395, %v1420
        %v1440 = vadd.f32 %v1397, %v1420
        %v1441 = vadd.f32 %v1312, %v1425
        %v1442 = vadd.f32 %v1314, %v1425
        %v1443 = vadd.f32 %v1401, %v1425
        %v1444 = vadd.f32 %v1403, %v1425
        %v1445 = vadd.f32 %v1318, %v1430
        %v1446 = vadd.f32 %v1320, %v1430
        %v1447 = vadd.f32 %v1407, %v1430
        %v1448 = vadd.f32 %v1409, %v1430
        %v1449 = vadd.f32 %v1324, %v1435
        %v1450 = vadd.f32 %v1326, %v1435
        %v1451 = vadd.f32 %v1413, %v1435
        %v1452 = vadd.f32 %v1415, %v1435
        %v1453 = vmax.f32 %v1437, 0.0
        %v1454 = vmax.f32 %v1438, 0.0
        %v1455 = vmax.f32 %v1439, 0.0
        %v1456 = vmax.f32 %v1440, 0.0
        %v1457 = vmax.f32 %v1441, 0.0
        %v1458 = vmax.f32 %v1442, 0.0
        %v1459 = vmax.f32 %v1443, 0.0
        %v1460 = vmax.f32 %v1444, 0.0
        %v1461 = vmax.f32 %v1445, 0.0
        %v1462 = vmax.f32 %v1446, 0.0
        %v1463 = vmax.f32 %v1447, 0.0
        %v1464 = vmax.f32 %v1448, 0.0
        %v1465 = vmax.f32 %v1449, 0.0
        %v1466 = vmax.f32 %v1450, 0.0
        %v1467 = vmax.f32 %v1451, 0.0
        %v1468 = vmax.f32 %v1452, 0.0
        %v1469 = vld [vmem:[%s8] sm:$0xff]
        %v1470 = vld [vmem:[%s8 + $0x8] sm:$0xff]
        %v1471 = vld [vmem:[%s8 + $0x10] sm:$0xff]
        %v1472 = vld [vmem:[%s8 + $0x18] sm:$0xff]
        %v1473 = vld [vmem:[%s9] sm:$0xff]
        %v1474 = vld [vmem:[%s9 + $0x8] sm:$0xff]
        %v1475 = vld [vmem:[%s9 + $0x10] sm:$0xff]
        %v1476 = vld [vmem:[%s9 + $0x18] sm:$0xff]
        %1478 = vset.pattern.permute.xlu0 0
        %1479 = vperm.xlu0 %1478, %v1473
        %v1480 = vpop.permute.xlu0 %1479
        %1483 = vset.pattern.permute.xlu0 0
        %1484 = vperm.xlu0 %1483, %v1474
        %v1485 = vpop.permute.xlu0 %1484
        %1488 = vset.pattern.permute.xlu0 0
        %1489 = vperm.xlu0 %1488, %v1475
        %v1490 = vpop.permute.xlu0 %1489
        %1493 = vset.pattern.permute.xlu0 0
        %1494 = vperm.xlu0 %1493, %v1476
        %v1495 = vpop.permute.xlu0 %1494
        %vm1497 = vcmask 261120
        %v1499 = vsel %vm1497, %v1469, 0
        %v1502 = vsel %vm1497, %v1470, 0
        %v1505 = vsel %vm1497, %v1471, 0
        %v1508 = vsel %vm1497, %v1472, 0
        %1510 = vmatprep.subr.mxu0 %v1454
        %1511 = vmatpush1.msra.mxu0 %v1453
        %1512 = vmatprep.subr.mxu0 %v1458
        %1513 = vmatpush1.msra.mxu0 %v1457
        %1514 = vmatprep.subr.mxu0 %v1462
        %1515 = vmatpush1.msra.mxu0 %v1461
        %1516 = vmatprep.subr.mxu0 %v1466
        %1517 = vmatpush1.msra.mxu0 %v1465
        %1518 = vmatprep.subr.mxu0 0.0
        %1519 = vmatpush1.msra.mxu0 0.0
        %1520 = vmatprep.subr.mxu0 0.0
        %1521 = vmatpush1.msra.mxu0 0.0
        %1522 = vmatprep.subr.mxu0 0.0
        %1523 = vmatpush1.msra.mxu0 0.0
        %1524 = vmatprep.subr.mxu0 0.0
        %1525 = vmatpush1.msra.mxu0 0.0
        %1526 = vmatprep.subr.mxu0 0.0
        %1527 = vmatpush1.msra.mxu0 0.0
        %1528 = vmatprep.subr.mxu0 0.0
        %1529 = vmatpush1.msra.mxu0 0.0
        %1530 = vmatprep.subr.mxu0 0.0
        %1531 = vmatpush1.msra.mxu0 0.0
        %1532 = vmatprep.subr.mxu0 0.0
        %1533 = vmatpush1.msra.mxu0 0.0
        %1534 = vmatprep.subr.mxu0 0.0
        %1535 = vmatpush1.msra.mxu0 0.0
        %1536 = vmatprep.subr.mxu0 0.0
        %1537 = vmatpush1.msra.mxu0 0.0
        %1538 = vmatprep.subr.mxu0 0.0
        %1539 = vmatpush1.msra.mxu0 0.0
        %1540 = vmatprep.subr.mxu0 0.0
        %1541 = vmatpush1.msra.mxu0 0.0
        %1542 = vmatprep.subr.mxu0 0.0
        %1543 = vmatpush1.msra.mxu0 0.0
        %1544 = vmatprep.subr.mxu0 0.0
        %1545 = vmatpush1.msra.mxu0 0.0
        %1546 = vmatprep.subr.mxu0 0.0
        %1547 = vmatpush1.msra.mxu0 0.0
        %1548 = vmatprep.subr.mxu0 0.0
        %1549 = vmatpush1.msra.mxu0 0.0
        %1550 = vmatprep.subr.mxu0 0.0
        %1551 = vmatpush1.msra.mxu0 0.0
        %1552 = vmatprep.subr.mxu0 0.0
        %1553 = vmatpush1.msra.mxu0 0.0
        %1554 = vmatprep.subr.mxu0 0.0
        %1555 = vmatpush1.msra.mxu0 0.0
        %1556 = vmatprep.subr.mxu0 0.0
        %1557 = vmatpush1.msra.mxu0 0.0
        %1558 = vmatprep.subr.mxu0 0.0
        %1559 = vmatpush1.msra.mxu0 0.0
        %1560 = vmatprep.subr.mxu0 0.0
        %1561 = vmatpush1.msra.mxu0 0.0
        %1562 = vmatprep.subr.mxu0 0.0
        %1563 = vmatpush1.msra.mxu0 0.0
        %1564 = vmatprep.subr.mxu0 0.0
        %1565 = vmatpush1.msra.mxu0 0.0
        %1566 = vmatprep.subr.mxu0 0.0
        %1567 = vmatpush1.msra.mxu0 0.0
        %1568 = vmatprep.subr.mxu0 0.0
        %1569 = vmatpush1.msra.mxu0 0.0
        %1570 = vmatprep.subr.mxu0 0.0
        %1571 = vmatpush1.msra.mxu0 0.0
        %1572 = vmatprep.subr.mxu0 0.0
        %1573 = vmatpush1.msra.mxu0 0.0
        %1574 = vmatprep.mubr.f32.mxu0 0.0
        %1575 = vmatmul.mubr.f32.gmra.mrb[0].mxu0 %v1499
        %v1576 = vpop.f32.mrb[0].mxu0
        %v1577 = vadd.f32 %v1480, %v1576
        %v1578 = vpop.f32.mrb[0].mxu0
        %v1579 = vadd.f32 %v1480, %v1578
        %1580 = vmatprep.mubr.f32.mxu0 0.0
        %1581 = vmatmul.mubr.f32.gmra.mrb[0].mxu0 %v1502
        %v1582 = vpop.f32.mrb[0].mxu0
        %v1583 = vadd.f32 %v1485, %v1582
        %v1584 = vpop.f32.mrb[0].mxu0
        %v1585 = vadd.f32 %v1485, %v1584
        %1586 = vmatprep.mubr.f32.mxu0 0.0
        %1587 = vmatmul.mubr.f32.gmra.mrb[0].mxu0 %v1505
        %v1588 = vpop.f32.mrb[0].mxu0
        %v1589 = vadd.f32 %v1490, %v1588
        %v1590 = vpop.f32.mrb[0].mxu0
        %v1591 = vadd.f32 %v1490, %v1590
        %1592 = vmatprep.mubr.f32.mxu0 0.0
        %1593 = vmatmul.mubr.f32.gmra.mrb[0].mxu0 %v1508
        %v1594 = vpop.f32.mrb[0].mxu0
        %v1595 = vadd.f32 %v1495, %v1594
        %v1596 = vpop.f32.mrb[0].mxu0
        %v1597 = vadd.f32 %v1495, %v1596
        %1598 = vdwg.mxu0
        %1599 = vmatprep.subr.mxu0 %v1456
        %1600 = vmatpush1.msra.mxu0 %v1455
        %1601 = vmatprep.subr.mxu0 %v1460
        %1602 = vmatpush1.msra.mxu0 %v1459
        %1603 = vmatprep.subr.mxu0 %v1464
        %1604 = vmatpush1.msra.mxu0 %v1463
        %1605 = vmatprep.subr.mxu0 %v1468
        %1606 = vmatpush1.msra.mxu0 %v1467
        %1607 = vmatprep.subr.mxu0 0.0
        %1608 = vmatpush1.msra.mxu0 0.0
        %1609 = vmatprep.subr.mxu0 0.0
        %1610 = vmatpush1.msra.mxu0 0.0
        %1611 = vmatprep.subr.mxu0 0.0
        %1612 = vmatpush1.msra.mxu0 0.0
        %1613 = vmatprep.subr.mxu0 0.0
        %1614 = vmatpush1.msra.mxu0 0.0
        %1615 = vmatprep.subr.mxu0 0.0
        %1616 = vmatpush1.msra.mxu0 0.0
        %1617 = vmatprep.subr.mxu0 0.0
        %1618 = vmatpush1.msra.mxu0 0.0
        %1619 = vmatprep.subr.mxu0 0.0
        %1620 = vmatpush1.msra.mxu0 0.0
        %1621 = vmatprep.subr.mxu0 0.0
        %1622 = vmatpush1.msra.mxu0 0.0
        %1623 = vmatprep.subr.mxu0 0.0
        %1624 = vmatpush1.msra.mxu0 0.0
        %1625 = vmatprep.subr.mxu0 0.0
        %1626 = vmatpush1.msra.mxu0 0.0
        %1627 = vmatprep.subr.mxu0 0.0
        %1628 = vmatpush1.msra.mxu0 0.0
        %1629 = vmatprep.subr.mxu0 0.0
        %1630 = vmatpush1.msra.mxu0 0.0
        %1631 = vmatprep.subr.mxu0 0.0
        %1632 = vmatpush1.msra.mxu0 0.0
        %1633 = vmatprep.subr.mxu0 0.0
        %1634 = vmatpush1.msra.mxu0 0.0
        %1635 = vmatprep.subr.mxu0 0.0
        %1636 = vmatpush1.msra.mxu0 0.0
        %1637 = vmatprep.subr.mxu0 0.0
        %1638 = vmatpush1.msra.mxu0 0.0
        %1639 = vmatprep.subr.mxu0 0.0
        %1640 = vmatpush1.msra.mxu0 0.0
        %1641 = vmatprep.subr.mxu0 0.0
        %1642 = vmatpush1.msra.mxu0 0.0
        %1643 = vmatprep.subr.mxu0 0.0
        %1644 = vmatpush1.msra.mxu0 0.0
        %1645 = vmatprep.subr.mxu0 0.0
        %1646 = vmatpush1.msra.mxu0 0.0
        %1647 = vmatprep.subr.mxu0 0.0
        %1648 = vmatpush1.msra.mxu0 0.0
        %1649 = vmatprep.subr.mxu0 0.0
        %1650 = vmatpush1.msra.mxu0 0.0
        %1651 = vmatprep.subr.mxu0 0.0
        %1652 = vmatpush1.msra.mxu0 0.0
        %1653 = vmatprep.subr.mxu0 0.0
        %1654 = vmatpush1.msra.mxu0 0.0
        %1655 = vmatprep.subr.mxu0 0.0
        %1656 = vmatpush1.msra.mxu0 0.0
        %1657 = vmatprep.subr.mxu0 0.0
        %1658 = vmatpush1.msra.mxu0 0.0
        %1659 = vmatprep.subr.mxu0 0.0
        %1660 = vmatpush1.msra.mxu0 0.0
        %1661 = vmatprep.subr.mxu0 0.0
        %1662 = vmatpush1.msra.mxu0 0.0
        %1663 = vmatprep.mubr.f32.mxu0 0.0
        %1664 = vmatmul.mubr.f32.gmra.mrb[0].mxu0 %v1499
        %v1665 = vpop.f32.mrb[0].mxu0
        %v1666 = vadd.f32 %v1480, %v1665
        %v1667 = vpop.f32.mrb[0].mxu0
        %v1668 = vadd.f32 %v1480, %v1667
        %1669 = vmatprep.mubr.f32.mxu0 0.0
        %1670 = vmatmul.mubr.f32.gmra.mrb[0].mxu0 %v1502
        %v1671 = vpop.f32.mrb[0].mxu0
        %v1672 = vadd.f32 %v1485, %v1671
        %v1673 = vpop.f32.mrb[0].mxu0
        %v1674 = vadd.f32 %v1485, %v1673
        %1675 = vmatprep.mubr.f32.mxu0 0.0
        %1676 = vmatmul.mubr.f32.gmra.mrb[0].mxu0 %v1505
        %v1677 = vpop.f32.mrb[0].mxu0
        %v1678 = vadd.f32 %v1490, %v1677
        %v1679 = vpop.f32.mrb[0].mxu0
        %v1680 = vadd.f32 %v1490, %v1679
        %1681 = vmatprep.mubr.f32.mxu0 0.0
        %1682 = vmatmul.mubr.f32.gmra.mrb[0].mxu0 %v1508
        %v1683 = vpop.f32.mrb[0].mxu0
        %v1684 = vadd.f32 %v1495, %v1683
        %v1685 = vpop.f32.mrb[0].mxu0
        %v1686 = vadd.f32 %v1495, %v1685
        %1687 = vdwg.mxu0
        %v1688 = vmax.f32 %v1577, 0.0
        %v1689 = vmax.f32 %v1579, 0.0
        %v1690 = vmax.f32 %v1666, 0.0
        %v1691 = vmax.f32 %v1668, 0.0
        %v1692 = vmax.f32 %v1583, 0.0
        %v1693 = vmax.f32 %v1585, 0.0
        %v1694 = vmax.f32 %v1672, 0.0
        %v1695 = vmax.f32 %v1674, 0.0
        %v1696 = vmax.f32 %v1589, 0.0
        %v1697 = vmax.f32 %v1591, 0.0
        %v1698 = vmax.f32 %v1678, 0.0
        %v1699 = vmax.f32 %v1680, 0.0
        %v1700 = vmax.f32 %v1595, 0.0
        %v1701 = vmax.f32 %v1597, 0.0
        %v1702 = vmax.f32 %v1684, 0.0
        %v1703 = vmax.f32 %v1686, 0.0
        %1704 = vst [vmem:[%s472] sm:$0xff] %v1688
        %1705 = vst [vmem:[%s472 + $0x8] sm:$0xff] %v1689
        %1706 = vst [vmem:[%s472 + $0x10] sm:$0xff] %v1690
        %1707 = vst [vmem:[%s472 + $0x18] sm:$0xff] %v1691
        %1708 = vst [vmem:[%s472 + $0x20] sm:$0xff] %v1692
        %1709 = vst [vmem:[%s472 + $0x28] sm:$0xff] %v1693
        %1710 = vst [vmem:[%s472 + $0x30] sm:$0xff] %v1694
        %1711 = vst [vmem:[%s472 + $0x38] sm:$0xff] %v1695
        %1712 = vst [vmem:[%s472 + $0x40] sm:$0xff] %v1696
        %1713 = vst [vmem:[%s472 + $0x48] sm:$0xff] %v1697
        %1714 = vst [vmem:[%s472 + $0x50] sm:$0xff] %v1698
        %1715 = vst [vmem:[%s472 + $0x58] sm:$0xff] %v1699
        %1716 = vst [vmem:[%s472 + $0x60] sm:$0xff] %v1700
        %1717 = vst [vmem:[%s472 + $0x68] sm:$0xff] %v1701
        %1718 = vst [vmem:[%s472 + $0x70] sm:$0xff] %v1702
        %1719 = vst [vmem:[%s472 + $0x78] sm:$0xff] %v1703
        %s1720 = sand.u32 %s292, 1
        %s1721 = scalar_lea.sflag [#allocation4], %s1720
        %s1722 = sand.u32 %s292, 1
        %s1723 = smul.addr %s1722, 128
        %s1724 = scalar_lea.vmem [#allocation3], %s1723
        // Predicated region
        $region68: #{tpu_custom_call.1} parent=59 // pred_check
          %p1725 = pneg %p302
        $region69: #{tpu_custom_call.1} parent=59 // pred_check_branch
          %1727 = sbr.rel (%p1725) target = $region71
        $region70: #{tpu_custom_call.1} parent=59 // pred_region
          %s1728 = smul.u32 4, %s29
          %s1730 = ssub.s32 2048, 2048
          %1731 = vsyncadd %s1721, %s1730
          %s1732 = smul.addr %s28, 16
          %s1733 = sadd.s32 %s1728, %s1732
          %s1734 = smul.addr %s1733, 128
          %s1735 = scalar_lea.hbm %s10, %s1734
          %s1736 = sshll.u32 %s1724, 4
          %s1737 = int_to_ptr.vmem [resolvable:$true] %s1736
          %1742 = dma.vmem_to_hbm [thread:$0]  %s1737, 2048, %s1735, %s1721, 512, 512, 32
        $region71: #{tpu_custom_call.1} parent=59 // pred_fallthru
          _
      $region60: #{tpu_custom_call.1} parent=5 // pred_fallthru
        _
      %p1743 = scmp.le.s32.totalorder 2, %s19
      // Predicated region
      $region72: #{tpu_custom_call.1} parent=5 // pred_check
        %p1744 = pneg %p1743
      $region73: #{tpu_custom_call.1} parent=5 // pred_check_branch
        %1746 = sbr.rel (%p1744) target = $region75
      $region74: #{tpu_custom_call.1} parent=5 // pred_region
        %s1747 = ssub.s32 %s19, 2
        // Predicated region
        $region76: #{tpu_custom_call.1} parent=74 // pred_check
          %p1748 = pneg %p308
        $region77: #{tpu_custom_call.1} parent=74 // pred_check_branch
          %1750 = sbr.rel (%p1748) target = $region79
        $region78: #{tpu_custom_call.1} parent=74 // pred_region
          %s1751 = sand.u32 %s293, 1
          %s1752 = scalar_lea.sflag [#allocation4], %s1751
          %s1753 = sand.u32 %s293, 1
          %s1754 = smul.addr %s1753, 128
          %s1755 = scalar_lea.vmem [#allocation3], %s1754
          %1756 = dma.done %s1752, 2048
        $region79: #{tpu_custom_call.1} parent=74 // pred_fallthru
          _
      $region75: #{tpu_custom_call.1} parent=5 // pred_fallthru
        _
    $region6: #{tpu_custom_call.1} parent=1 // loop_footer
      %s23 = sadd.s32 1, %s19
    $region7: #{tpu_custom_call.1} parent=1 // loop_footer_branch
      %18 = sbr.rel target = $region3
    $region8: #{tpu_custom_call.1} parent=1 // loop_exit
      _
    %1757 = vsyncpa [#allocation4], 1
    %s1758 = scalar_lea.sflag [#allocation4], 1
    %1759 = vsyncpa %s1758, 1

</llo_original>
